<compile_context>
chip_gen: v5e
topology: v5e:2x2
jax: 0.10.0
libtpu: 0.0.40
codegen_flags: <defaults>
</compile_context>

<pallas_src>
import jax
import jax.numpy as jnp
from jax import lax
from jax.experimental import pallas as pl
from jax.experimental.pallas import tpu as pltpu


# ----------------------------- config ---------------------------------------
N, H, W = 2, 16, 16
C_IN, C_EXP, C_OUT = 16, 64, 16        # already divisible by 8 (_make_divisible)
C_SQ = 16                              # _make_divisible(64 // 4, 8)
K = 3                                  # depthwise kernel size
BN_EPS = 1e-5

HW = H * W
NC_IN, NC_EXP, NC_SQ, NC_OUT = N * C_IN, N * C_EXP, N * C_SQ, N * C_OUT
assert NC_EXP == 128, "lane packing below assumes N*C_EXP == 128"


def _hardswish(x):
    return x * jnp.clip(x + 3.0, 0.0, 6.0) * (1.0 / 6.0)


def _hardsigmoid(x):
    return jnp.clip(x + 3.0, 0.0, 6.0) * (1.0 / 6.0)


# ----------------------------- Pallas kernel --------------------------------
def inverted_residual_kernel(
    x_ref,      # (HW, NC_IN)    rows = (h, w), lanes = n*C_IN + c
    wexp_ref,   # (NC_IN, NC_EXP)   block-diag expand 1x1 (BN folded)
    wdw_ref,    # (K*K, NC_EXP)     depthwise 3x3 weights, tiled over N on lanes
    wfc1_ref,   # (NC_EXP, NC_SQ)   block-diag SE fc1
    wfc2_ref,   # (NC_SQ, NC_EXP)   block-diag SE fc2
    wproj_ref,  # (NC_EXP, NC_OUT)  block-diag project 1x1 (BN folded)
    bias_ref,   # (8, 128) packed biases: rows = exp, dw, fc1, fc2, proj
    o_ref,      # (HW, NC_OUT)
):
    x2 = x_ref[...]                                   # (256, 32)
    bias = bias_ref[...]                              # (8, 128)

    # ---- 1x1 expand conv + folded BN + Hardswish (batch folded into M) ----
    e = jnp.dot(x2, wexp_ref[...], preferred_element_type=jnp.float32)  # (256, 128)
    e = _hardswish(e + bias[0:1, :])

    # ---- 3x3 depthwise conv (stride 1, pad 1), entirely in vregs ----------
    # H direction: aligned slab slices of an H-zero-padded value.
    # W direction: sublane roll by +/-1 with the wrapped column zeroed via a
    #              mask folded into the per-tap weight (XLU does the shifts,
    #              no VMEM scratch, no misaligned stores).
    wdw = wdw_ref[...]                                # (9, 128)
    zrows = jnp.zeros((W, NC_EXP), jnp.float32)       # one zero image-row
    w_iota = lax.broadcasted_iota(jnp.int32, (W, NC_EXP), 0)
    mask_l = (w_iota >= 1).astype(jnp.float32)        # valid taps for dx = -1
    mask_r = (w_iota <= W - 2).astype(jnp.float32)    # valid taps for dx = +1

    acc = jnp.zeros((H, W, NC_EXP), jnp.float32)
    for ky in range(K):
        dy = ky - 1
        if dy < 0:                                    # rows shifted down, zero top
            slab = jnp.concatenate([zrows, e[:HW - W]], axis=0)
        elif dy == 0:
            slab = e
        else:                                         # rows shifted up, zero bottom
            slab = jnp.concatenate([e[W:], zrows], axis=0)
        center = slab.reshape(H, W, NC_EXP)           # tap at (h+dy, w)
        left = pltpu.roll(slab, shift=1, axis=0).reshape(H, W, NC_EXP)       # (h+dy, w-1)
        right = pltpu.roll(slab, shift=HW - 1, axis=0).reshape(H, W, NC_EXP)  # (h+dy, w+1)
        acc = acc + left * (mask_l * wdw[ky * K + 0])
        acc = acc + center * wdw[ky * K + 1]
        acc = acc + right * (mask_r * wdw[ky * K + 2])
    d = _hardswish(acc + bias[1:2, :])                # (16, 16, 128)
    d2 = d.reshape(HW, NC_EXP)                        # (256, 128)

    # ---- Squeeze-Excitation (both images packed into one lane row) --------
    pooled = jnp.sum(d2, axis=0, keepdims=True) * (1.0 / HW)                 # (1, 128)
    s = jnp.dot(pooled, wfc1_ref[...], preferred_element_type=jnp.float32)   # (1, 32)
    s = jnp.maximum(s + bias[2:3, 0:NC_SQ], 0.0)                             # ReLU
    s = jnp.dot(s, wfc2_ref[...], preferred_element_type=jnp.float32)        # (1, 128)
    s = _hardsigmoid(s + bias[3:4, :])
    se = d2 * s                                                              # (256, 128)

    # ---- 1x1 project conv + folded BN (Identity) + residual ---------------
    out = jnp.dot(se, wproj_ref[...], preferred_element_type=jnp.float32)    # (256, 32)
    o_ref[...] = out + bias[4:5, 0:NC_OUT] + x2


@jax.jit
def inverted_residual_pallas(x_nchw, packed):
    # One relayout at the block boundary: NCHW -> (H, W, N, C) -> (HW, N*C).
    x2 = jnp.transpose(x_nchw.astype(jnp.float32), (2, 3, 0, 1)).reshape(HW, NC_IN)

    def fullspec(shape):
        return pl.BlockSpec(shape, lambda i: (0,) * len(shape))

    out2 = pl.pallas_call(
        inverted_residual_kernel,
        out_shape=jax.ShapeDtypeStruct((HW, NC_OUT), jnp.float32),
        grid=(1,),
        in_specs=[
            fullspec((HW, NC_IN)),
            fullspec((NC_IN, NC_EXP)),
            fullspec((K * K, NC_EXP)),
            fullspec((NC_EXP, NC_SQ)),
            fullspec((NC_SQ, NC_EXP)),
            fullspec((NC_EXP, NC_OUT)),
            fullspec((8, 128)),
        ],
        out_specs=fullspec((HW, NC_OUT)),
        compiler_params=pltpu.CompilerParams(dimension_semantics=("arbitrary",)),
    )(
        x2,
        packed["w_exp"], packed["w_dw"], packed["w_fc1"],
        packed["w_fc2"], packed["w_proj"], packed["biases"],
    )

    # (HW, N*C_OUT) -> (H, W, N, C_OUT) -> NCHW
    return out2.reshape(H, W, N, C_OUT).transpose(2, 3, 0, 1)


# ----------------------------- parameter setup -------------------------------
def fold_bn(gamma, beta, mean, var):
    scale = gamma / jnp.sqrt(var + BN_EPS)
    bias = beta - mean * scale
    return scale, bias


def make_params(key):
    ks = jax.random.split(key, 16)
    normal = lambda k, s, sc=0.1: (jax.random.normal(k, s) * sc).astype(jnp.float32)
    unif = lambda k, s: jax.random.uniform(k, s, minval=0.5, maxval=1.5).astype(jnp.float32)

    # expand 1x1 conv (no bias) + BN
    w_exp = normal(ks[0], (C_IN, C_EXP))
    sc_e, b_e = fold_bn(unif(ks[1], (C_EXP,)), normal(ks[2], (C_EXP,)),
                        normal(ks[3], (C_EXP,)), unif(ks[4], (C_EXP,)))
    # depthwise 3x3 conv (no bias) + BN
    w_dw = normal(ks[5], (K, K, C_EXP))
    sc_d, b_d = fold_bn(unif(ks[6], (C_EXP,)), normal(ks[7], (C_EXP,)),
                        normal(ks[8], (C_EXP,)), unif(ks[9], (C_EXP,)))
    # SE 1x1 convs (with bias, no BN)
    w_fc1 = normal(ks[10], (C_EXP, C_SQ)); b_fc1 = normal(ks[11], (C_SQ,))
    w_fc2 = normal(ks[12], (C_SQ, C_EXP)); b_fc2 = normal(ks[13], (C_EXP,))
    # project 1x1 conv (no bias) + BN (Identity activation)
    w_proj = normal(ks[14], (C_EXP, C_OUT))
    sc_p, b_p = fold_bn(unif(ks[15], (C_OUT,)), normal(ks[0], (C_OUT,)),
                        normal(ks[1], (C_OUT,)), unif(ks[2], (C_OUT,)))

    return {
        "w_exp": w_exp * sc_e[None, :], "b_exp": b_e,
        "w_dw": w_dw * sc_d[None, None, :], "b_dw": b_d,
        "w_fc1": w_fc1, "b_fc1": b_fc1,
        "w_fc2": w_fc2, "b_fc2": b_fc2,
        "w_proj": w_proj * sc_p[None, :], "b_proj": b_p,
    }


def _block_diag_n(w, n):
    r, c = w.shape
    out = jnp.zeros((n * r, n * c), w.dtype)
    for i in range(n):
        out = out.at[i * r:(i + 1) * r, i * c:(i + 1) * c].set(w)
    return out


def pack_params(p):
    """Done once at parameter-load time (outside the kernel)."""
    w_exp_blk = _block_diag_n(p["w_exp"], N)      # (32, 128)
    w_fc1_blk = _block_diag_n(p["w_fc1"], N)      # (128, 32)
    w_fc2_blk = _block_diag_n(p["w_fc2"], N)      # (32, 128)
    w_proj_blk = _block_diag_n(p["w_proj"], N)    # (128, 32)
    w_dw_t = jnp.tile(p["w_dw"].reshape(K * K, C_EXP), (1, N))   # (9, 128)

    def row(v):
        v = jnp.tile(v, N)
        return jnp.pad(v, (0, 128 - v.shape[0]))

    biases = jnp.stack([
        row(p["b_exp"]), row(p["b_dw"]), row(p["b_fc1"]),
        row(p["b_fc2"]), row(p["b_proj"]),
        jnp.zeros((128,), jnp.float32), jnp.zeros((128,), jnp.float32),
        jnp.zeros((128,), jnp.float32),
    ]).astype(jnp.float32)                        # (8, 128)

    return {"w_exp": w_exp_blk, "w_dw": w_dw_t, "w_fc1": w_fc1_blk,
            "w_fc2": w_fc2_blk, "w_proj": w_proj_blk, "biases": biases}


# ----------------------------- pure-JAX reference ----------------------------
def inverted_residual_ref(x_nchw, p):
    x = jnp.transpose(x_nchw, (0, 2, 3, 1)).astype(jnp.float32)     # NHWC
    e = _hardswish(jnp.einsum("nhwc,cd->nhwd", x, p["w_exp"]) + p["b_exp"])
    w = p["w_dw"].reshape(K, K, 1, C_EXP)
    d = lax.conv_general_dilated(
        e, w, window_strides=(1, 1), padding="SAME",
        dimension_numbers=("NHWC", "HWIO", "NHWC"),
        feature_group_count=C_EXP)
    d = _hardswish(d + p["b_dw"])
    pooled = jnp.mean(d, axis=(1, 2))                               # (N, C_EXP)
    s = jnp.maximum(pooled @ p["w_fc1"] + p["b_fc1"], 0.0)
    s = _hardsigmoid(s @ p["w_fc2"] + p["b_fc2"])
    se = d * s[:, None, None, :]
    out = jnp.einsum("nhwc,cd->nhwd", se, p["w_proj"]) + p["b_proj"] + x
    return jnp.transpose(out, (0, 3, 1, 2))


# ----------------------------- main ------------------------------------------
if __name__ == "__main__":
    key = jax.random.PRNGKey(0)
    kx, kp = jax.random.split(key)
    x = jax.random.normal(kx, (N, C_IN, H, W), dtype=jnp.float32)   # NCHW like PyTorch
    params = make_params(kp)
    packed = pack_params(params)

    out = inverted_residual_pallas(x, packed)
    out = jax.block_until_ready(out)

    ref = inverted_residual_ref(x, params)
    assert out.shape == (N, C_OUT, H, W)
    err = jnp.max(jnp.abs(out - ref))
    assert jnp.allclose(out, ref, atol=1e-4, rtol=1e-4), f"max abs err {err}"

    print("KERNEL_OK")
</pallas_src>

<mosaic_0001>
module attributes {stable_mosaic.version = 11 : i64} {
  func.func @inverted_residual_kernel(%arg0: i32, %arg1: memref<256x32xf32, #tpu.memory_space<vmem>>, %arg2: memref<32x128xf32, #tpu.memory_space<vmem>>, %arg3: memref<9x128xf32, #tpu.memory_space<vmem>>, %arg4: memref<128x32xf32, #tpu.memory_space<vmem>>, %arg5: memref<32x128xf32, #tpu.memory_space<vmem>>, %arg6: memref<128x32xf32, #tpu.memory_space<vmem>>, %arg7: memref<8x128xf32, #tpu.memory_space<vmem>>, %arg8: memref<256x32xf32, #tpu.memory_space<vmem>>) attributes {dimension_semantics = [#tpu.dimension_semantics<arbitrary>], iteration_bounds = array<i64: 1>, scalar_prefetch = 0 : i64, scratch_operands = 0 : i64, tpu.core_type = #tpu.core_type<tc>, window_params = [{pipeline_mode = #tpu.pipeline_mode<synchronous>, transform_indices = @transform_0, window_bounds = array<i64: 256, 32>}, {pipeline_mode = #tpu.pipeline_mode<synchronous>, transform_indices = @transform_1, window_bounds = array<i64: 32, 128>}, {pipeline_mode = #tpu.pipeline_mode<synchronous>, transform_indices = @transform_2, window_bounds = array<i64: 9, 128>}, {pipeline_mode = #tpu.pipeline_mode<synchronous>, transform_indices = @transform_3, window_bounds = array<i64: 128, 32>}, {pipeline_mode = #tpu.pipeline_mode<synchronous>, transform_indices = @transform_4, window_bounds = array<i64: 32, 128>}, {pipeline_mode = #tpu.pipeline_mode<synchronous>, transform_indices = @transform_5, window_bounds = array<i64: 128, 32>}, {pipeline_mode = #tpu.pipeline_mode<synchronous>, transform_indices = @transform_6, window_bounds = array<i64: 8, 128>}, {pipeline_mode = #tpu.pipeline_mode<synchronous>, transform_indices = @transform_7, window_bounds = array<i64: 256, 32>}]} {
    %c0 = arith.constant 0 : index
    %c0_0 = arith.constant 0 : index
    %0 = vector.load %arg1[%c0, %c0_0] : memref<256x32xf32, #tpu.memory_space<vmem>>, vector<256x32xf32>
    %c0_1 = arith.constant 0 : index
    %c0_2 = arith.constant 0 : index
    %1 = vector.load %arg7[%c0_1, %c0_2] : memref<8x128xf32, #tpu.memory_space<vmem>>, vector<8x128xf32>
    %c0_3 = arith.constant 0 : index
    %c0_4 = arith.constant 0 : index
    %2 = vector.load %arg2[%c0_3, %c0_4] : memref<32x128xf32, #tpu.memory_space<vmem>>, vector<32x128xf32>
    %cst = arith.constant dense<0.000000e+00> : vector<256x128xf32>
    %3 = tpu.matmul %0, %2, %cst {dimension_numbers = #tpu.dot_dimension_numbers<[1], [0], [0], [1], [0, 0, 1, 1], [], []>} : vector<256x32xf32>, vector<32x128xf32>, vector<256x128xf32> -> vector<256x128xf32>
    %4 = vector.extract_strided_slice %1 {offsets = [0, 0], sizes = [1, 128], strides = [1, 1]} : vector<8x128xf32> to vector<1x128xf32>
    %5 = vector.broadcast %4 : vector<1x128xf32> to vector<256x128xf32>
    %6 = arith.addf %3, %5 : vector<256x128xf32>
    %cst_5 = arith.constant 3.000000e+00 : f32
    %7 = vector.broadcast %cst_5 : f32 to vector<256x128xf32>
    %8 = arith.addf %6, %7 : vector<256x128xf32>
    %cst_6 = arith.constant 0.000000e+00 : f32
    %cst_7 = arith.constant 6.000000e+00 : f32
    %9 = vector.broadcast %cst_6 : f32 to vector<256x128xf32>
    %10 = arith.maximumf %9, %8 : vector<256x128xf32>
    %11 = vector.broadcast %cst_7 : f32 to vector<256x128xf32>
    %12 = arith.minimumf %11, %10 : vector<256x128xf32>
    %13 = arith.mulf %6, %12 : vector<256x128xf32>
    %cst_8 = arith.constant 0.166666672 : f32
    %14 = vector.broadcast %cst_8 : f32 to vector<256x128xf32>
    %15 = arith.mulf %13, %14 : vector<256x128xf32>
    %c0_9 = arith.constant 0 : index
    %c0_10 = arith.constant 0 : index
    %16 = vector.load %arg3[%c0_9, %c0_10] : memref<9x128xf32, #tpu.memory_space<vmem>>, vector<9x128xf32>
    %cst_11 = arith.constant 0.000000e+00 : f32
    %17 = vector.broadcast %cst_11 : f32 to vector<16x128xf32>
    %18 = tpu.iota {dimensions = array<i32: 0>} : vector<16x128xi32>
    %c1_i32 = arith.constant 1 : i32
    %19 = vector.broadcast %c1_i32 : i32 to vector<16x128xi32>
    %20 = arith.cmpi sge, %18, %19 : vector<16x128xi32>
    %21 = arith.extui %20 : vector<16x128xi1> to vector<16x128xi32>
    %22 = arith.sitofp %21 : vector<16x128xi32> to vector<16x128xf32>
    %c14_i32 = arith.constant 14 : i32
    %23 = vector.broadcast %c14_i32 : i32 to vector<16x128xi32>
    %24 = arith.cmpi sle, %18, %23 : vector<16x128xi32>
    %25 = arith.extui %24 : vector<16x128xi1> to vector<16x128xi32>
    %26 = arith.sitofp %25 : vector<16x128xi32> to vector<16x128xf32>
    %cst_12 = arith.constant 0.000000e+00 : f32
    %27 = vector.broadcast %cst_12 : f32 to vector<16x16x128xf32>
    %28 = vector.extract_strided_slice %15 {offsets = [0, 0], sizes = [240, 128], strides = [1, 1]} : vector<256x128xf32> to vector<240x128xf32>
    %29 = tpu.concatenate %17, %28 in 0 : vector<16x128xf32>, vector<240x128xf32> -> vector<256x128xf32>
    %30 = vector.shape_cast %29 : vector<256x128xf32> to vector<16x16x128xf32>
    %c1_i32_13 = arith.constant 1 : i32
    %31 = tpu.dynamic_rotate %29 by %c1_i32_13 dim 0 : vector<256x128xf32>, i32 -> vector<256x128xf32>
    %32 = vector.shape_cast %31 : vector<256x128xf32> to vector<16x16x128xf32>
    %c255_i32 = arith.constant 255 : i32
    %33 = tpu.dynamic_rotate %29 by %c255_i32 dim 0 : vector<256x128xf32>, i32 -> vector<256x128xf32>
    %34 = vector.shape_cast %33 : vector<256x128xf32> to vector<16x16x128xf32>
    %35 = vector.extract_strided_slice %16 {offsets = [0, 0], sizes = [1, 128], strides = [1, 1]} : vector<9x128xf32> to vector<1x128xf32>
    %36 = vector.shape_cast %35 : vector<1x128xf32> to vector<128xf32>
    %37 = vector.shape_cast %36 : vector<128xf32> to vector<1x128xf32>
    %38 = vector.broadcast %37 : vector<1x128xf32> to vector<16x128xf32>
    %39 = arith.mulf %22, %38 : vector<16x128xf32>
    %40 = vector.shape_cast %39 : vector<16x128xf32> to vector<1x16x128xf32>
    %41 = vector.broadcast %40 : vector<1x16x128xf32> to vector<16x16x128xf32>
    %42 = arith.mulf %32, %41 : vector<16x16x128xf32>
    %43 = arith.addf %27, %42 : vector<16x16x128xf32>
    %44 = vector.extract_strided_slice %16 {offsets = [1, 0], sizes = [1, 128], strides = [1, 1]} : vector<9x128xf32> to vector<1x128xf32>
    %45 = vector.shape_cast %44 : vector<1x128xf32> to vector<128xf32>
    %46 = vector.shape_cast %45 : vector<128xf32> to vector<1x1x128xf32>
    %47 = vector.broadcast %46 : vector<1x1x128xf32> to vector<16x16x128xf32>
    %48 = arith.mulf %30, %47 : vector<16x16x128xf32>
    %49 = arith.addf %43, %48 : vector<16x16x128xf32>
    %50 = vector.extract_strided_slice %16 {offsets = [2, 0], sizes = [1, 128], strides = [1, 1]} : vector<9x128xf32> to vector<1x128xf32>
    %51 = vector.shape_cast %50 : vector<1x128xf32> to vector<128xf32>
    %52 = vector.shape_cast %51 : vector<128xf32> to vector<1x128xf32>
    %53 = vector.broadcast %52 : vector<1x128xf32> to vector<16x128xf32>
    %54 = arith.mulf %26, %53 : vector<16x128xf32>
    %55 = vector.shape_cast %54 : vector<16x128xf32> to vector<1x16x128xf32>
    %56 = vector.broadcast %55 : vector<1x16x128xf32> to vector<16x16x128xf32>
    %57 = arith.mulf %34, %56 : vector<16x16x128xf32>
    %58 = arith.addf %49, %57 : vector<16x16x128xf32>
    %59 = vector.shape_cast %15 : vector<256x128xf32> to vector<16x16x128xf32>
    %c1_i32_14 = arith.constant 1 : i32
    %60 = tpu.dynamic_rotate %15 by %c1_i32_14 dim 0 : vector<256x128xf32>, i32 -> vector<256x128xf32>
    %61 = vector.shape_cast %60 : vector<256x128xf32> to vector<16x16x128xf32>
    %c255_i32_15 = arith.constant 255 : i32
    %62 = tpu.dynamic_rotate %15 by %c255_i32_15 dim 0 : vector<256x128xf32>, i32 -> vector<256x128xf32>
    %63 = vector.shape_cast %62 : vector<256x128xf32> to vector<16x16x128xf32>
    %64 = vector.extract_strided_slice %16 {offsets = [3, 0], sizes = [1, 128], strides = [1, 1]} : vector<9x128xf32> to vector<1x128xf32>
    %65 = vector.shape_cast %64 : vector<1x128xf32> to vector<128xf32>
    %66 = vector.shape_cast %65 : vector<128xf32> to vector<1x128xf32>
    %67 = vector.broadcast %66 : vector<1x128xf32> to vector<16x128xf32>
    %68 = arith.mulf %22, %67 : vector<16x128xf32>
    %69 = vector.shape_cast %68 : vector<16x128xf32> to vector<1x16x128xf32>
    %70 = vector.broadcast %69 : vector<1x16x128xf32> to vector<16x16x128xf32>
    %71 = arith.mulf %61, %70 : vector<16x16x128xf32>
    %72 = arith.addf %58, %71 : vector<16x16x128xf32>
    %73 = vector.extract_strided_slice %16 {offsets = [4, 0], sizes = [1, 128], strides = [1, 1]} : vector<9x128xf32> to vector<1x128xf32>
    %74 = vector.shape_cast %73 : vector<1x128xf32> to vector<128xf32>
    %75 = vector.shape_cast %74 : vector<128xf32> to vector<1x1x128xf32>
    %76 = vector.broadcast %75 : vector<1x1x128xf32> to vector<16x16x128xf32>
    %77 = arith.mulf %59, %76 : vector<16x16x128xf32>
    %78 = arith.addf %72, %77 : vector<16x16x128xf32>
    %79 = vector.extract_strided_slice %16 {offsets = [5, 0], sizes = [1, 128], strides = [1, 1]} : vector<9x128xf32> to vector<1x128xf32>
    %80 = vector.shape_cast %79 : vector<1x128xf32> to vector<128xf32>
    %81 = vector.shape_cast %80 : vector<128xf32> to vector<1x128xf32>
    %82 = vector.broadcast %81 : vector<1x128xf32> to vector<16x128xf32>
    %83 = arith.mulf %26, %82 : vector<16x128xf32>
    %84 = vector.shape_cast %83 : vector<16x128xf32> to vector<1x16x128xf32>
    %85 = vector.broadcast %84 : vector<1x16x128xf32> to vector<16x16x128xf32>
    %86 = arith.mulf %63, %85 : vector<16x16x128xf32>
    %87 = arith.addf %78, %86 : vector<16x16x128xf32>
    %88 = vector.extract_strided_slice %15 {offsets = [16, 0], sizes = [240, 128], strides = [1, 1]} : vector<256x128xf32> to vector<240x128xf32>
    %89 = tpu.concatenate %88, %17 in 0 : vector<240x128xf32>, vector<16x128xf32> -> vector<256x128xf32>
    %90 = vector.shape_cast %89 : vector<256x128xf32> to vector<16x16x128xf32>
    %c1_i32_16 = arith.constant 1 : i32
    %91 = tpu.dynamic_rotate %89 by %c1_i32_16 dim 0 : vector<256x128xf32>, i32 -> vector<256x128xf32>
    %92 = vector.shape_cast %91 : vector<256x128xf32> to vector<16x16x128xf32>
    %c255_i32_17 = arith.constant 255 : i32
    %93 = tpu.dynamic_rotate %89 by %c255_i32_17 dim 0 : vector<256x128xf32>, i32 -> vector<256x128xf32>
    %94 = vector.shape_cast %93 : vector<256x128xf32> to vector<16x16x128xf32>
    %95 = vector.extract_strided_slice %16 {offsets = [6, 0], sizes = [1, 128], strides = [1, 1]} : vector<9x128xf32> to vector<1x128xf32>
    %96 = vector.shape_cast %95 : vector<1x128xf32> to vector<128xf32>
    %97 = vector.shape_cast %96 : vector<128xf32> to vector<1x128xf32>
    %98 = vector.broadcast %97 : vector<1x128xf32> to vector<16x128xf32>
    %99 = arith.mulf %22, %98 : vector<16x128xf32>
    %100 = vector.shape_cast %99 : vector<16x128xf32> to vector<1x16x128xf32>
    %101 = vector.broadcast %100 : vector<1x16x128xf32> to vector<16x16x128xf32>
    %102 = arith.mulf %92, %101 : vector<16x16x128xf32>
    %103 = arith.addf %87, %102 : vector<16x16x128xf32>
    %104 = vector.extract_strided_slice %16 {offsets = [7, 0], sizes = [1, 128], strides = [1, 1]} : vector<9x128xf32> to vector<1x128xf32>
    %105 = vector.shape_cast %104 : vector<1x128xf32> to vector<128xf32>
    %106 = vector.shape_cast %105 : vector<128xf32> to vector<1x1x128xf32>
    %107 = vector.broadcast %106 : vector<1x1x128xf32> to vector<16x16x128xf32>
    %108 = arith.mulf %90, %107 : vector<16x16x128xf32>
    %109 = arith.addf %103, %108 : vector<16x16x128xf32>
    %110 = vector.extract_strided_slice %16 {offsets = [8, 0], sizes = [1, 128], strides = [1, 1]} : vector<9x128xf32> to vector<1x128xf32>
    %111 = vector.shape_cast %110 : vector<1x128xf32> to vector<128xf32>
    %112 = vector.shape_cast %111 : vector<128xf32> to vector<1x128xf32>
    %113 = vector.broadcast %112 : vector<1x128xf32> to vector<16x128xf32>
    %114 = arith.mulf %26, %113 : vector<16x128xf32>
    %115 = vector.shape_cast %114 : vector<16x128xf32> to vector<1x16x128xf32>
    %116 = vector.broadcast %115 : vector<1x16x128xf32> to vector<16x16x128xf32>
    %117 = arith.mulf %94, %116 : vector<16x16x128xf32>
    %118 = arith.addf %109, %117 : vector<16x16x128xf32>
    %119 = vector.extract_strided_slice %1 {offsets = [1, 0], sizes = [1, 128], strides = [1, 1]} : vector<8x128xf32> to vector<1x128xf32>
    %120 = vector.shape_cast %119 : vector<1x128xf32> to vector<1x1x128xf32>
    %121 = vector.broadcast %120 : vector<1x1x128xf32> to vector<16x16x128xf32>
    %122 = arith.addf %118, %121 : vector<16x16x128xf32>
    %cst_18 = arith.constant 3.000000e+00 : f32
    %123 = vector.broadcast %cst_18 : f32 to vector<16x16x128xf32>
    %124 = arith.addf %122, %123 : vector<16x16x128xf32>
    %cst_19 = arith.constant 0.000000e+00 : f32
    %cst_20 = arith.constant 6.000000e+00 : f32
    %125 = vector.broadcast %cst_19 : f32 to vector<16x16x128xf32>
    %126 = arith.maximumf %125, %124 : vector<16x16x128xf32>
    %127 = vector.broadcast %cst_20 : f32 to vector<16x16x128xf32>
    %128 = arith.minimumf %127, %126 : vector<16x16x128xf32>
    %129 = arith.mulf %122, %128 : vector<16x16x128xf32>
    %cst_21 = arith.constant 0.166666672 : f32
    %130 = vector.broadcast %cst_21 : f32 to vector<16x16x128xf32>
    %131 = arith.mulf %129, %130 : vector<16x16x128xf32>
    %132 = vector.shape_cast %131 : vector<16x16x128xf32> to vector<256x128xf32>
    %cst_22 = arith.constant dense<0.000000e+00> : vector<128xf32>
    %133 = vector.multi_reduction <add>, %132, %cst_22 [0] : vector<256x128xf32> to vector<128xf32>
    %134 = vector.shape_cast %133 : vector<128xf32> to vector<1x128xf32>
    %cst_23 = arith.constant 3.906250e-03 : f32
    %135 = vector.broadcast %cst_23 : f32 to vector<1x128xf32>
    %136 = arith.mulf %134, %135 : vector<1x128xf32>
    %c0_24 = arith.constant 0 : index
    %c0_25 = arith.constant 0 : index
    %137 = vector.load %arg4[%c0_24, %c0_25] : memref<128x32xf32, #tpu.memory_space<vmem>>, vector<128x32xf32>
    %cst_26 = arith.constant dense<0.000000e+00> : vector<1x32xf32>
    %138 = tpu.matmul %136, %137, %cst_26 {dimension_numbers = #tpu.dot_dimension_numbers<[1], [0], [0], [1], [0, 0, 1, 1], [], []>} : vector<1x128xf32>, vector<128x32xf32>, vector<1x32xf32> -> vector<1x32xf32>
    %139 = vector.extract_strided_slice %1 {offsets = [2, 0], sizes = [1, 32], strides = [1, 1]} : vector<8x128xf32> to vector<1x32xf32>
    %140 = arith.addf %138, %139 : vector<1x32xf32>
    %cst_27 = arith.constant 0.000000e+00 : f32
    %141 = vector.broadcast %cst_27 : f32 to vector<1x32xf32>
    %142 = arith.maximumf %140, %141 : vector<1x32xf32>
    %c0_28 = arith.constant 0 : index
    %c0_29 = arith.constant 0 : index
    %143 = vector.load %arg5[%c0_28, %c0_29] : memref<32x128xf32, #tpu.memory_space<vmem>>, vector<32x128xf32>
    %cst_30 = arith.constant dense<0.000000e+00> : vector<1x128xf32>
    %144 = tpu.matmul %142, %143, %cst_30 {dimension_numbers = #tpu.dot_dimension_numbers<[1], [0], [0], [1], [0, 0, 1, 1], [], []>} : vector<1x32xf32>, vector<32x128xf32>, vector<1x128xf32> -> vector<1x128xf32>
    %145 = vector.extract_strided_slice %1 {offsets = [3, 0], sizes = [1, 128], strides = [1, 1]} : vector<8x128xf32> to vector<1x128xf32>
    %146 = arith.addf %144, %145 : vector<1x128xf32>
    %cst_31 = arith.constant 3.000000e+00 : f32
    %147 = vector.broadcast %cst_31 : f32 to vector<1x128xf32>
    %148 = arith.addf %146, %147 : vector<1x128xf32>
    %cst_32 = arith.constant 0.000000e+00 : f32
    %cst_33 = arith.constant 6.000000e+00 : f32
    %149 = vector.broadcast %cst_32 : f32 to vector<1x128xf32>
    %150 = arith.maximumf %149, %148 : vector<1x128xf32>
    %151 = vector.broadcast %cst_33 : f32 to vector<1x128xf32>
    %152 = arith.minimumf %151, %150 : vector<1x128xf32>
    %cst_34 = arith.constant 0.166666672 : f32
    %153 = vector.broadcast %cst_34 : f32 to vector<1x128xf32>
    %154 = arith.mulf %152, %153 : vector<1x128xf32>
    %155 = vector.broadcast %154 : vector<1x128xf32> to vector<256x128xf32>
    %156 = arith.mulf %132, %155 : vector<256x128xf32>
    %c0_35 = arith.constant 0 : index
    %c0_36 = arith.constant 0 : index
    %157 = vector.load %arg6[%c0_35, %c0_36] : memref<128x32xf32, #tpu.memory_space<vmem>>, vector<128x32xf32>
    %cst_37 = arith.constant dense<0.000000e+00> : vector<256x32xf32>
    %158 = tpu.matmul %156, %157, %cst_37 {dimension_numbers = #tpu.dot_dimension_numbers<[1], [0], [0], [1], [0, 0, 1, 1], [], []>} : vector<256x128xf32>, vector<128x32xf32>, vector<256x32xf32> -> vector<256x32xf32>
    %159 = vector.extract_strided_slice %1 {offsets = [4, 0], sizes = [1, 32], strides = [1, 1]} : vector<8x128xf32> to vector<1x32xf32>
    %160 = vector.broadcast %159 : vector<1x32xf32> to vector<256x32xf32>
    %161 = arith.addf %158, %160 : vector<256x32xf32>
    %162 = arith.addf %161, %0 : vector<256x32xf32>
    %c0_38 = arith.constant 0 : index
    %c0_39 = arith.constant 0 : index
    %163 = vector.load %arg8[%c0_38, %c0_39] : memref<256x32xf32, #tpu.memory_space<vmem>>, vector<256x32xf32>
    tpu.vector_store %arg8[%c0_38, %c0_39], %162 {strides = array<i32>} : memref<256x32xf32, #tpu.memory_space<vmem>>, vector<256x32xf32>,
    return
  }
  func.func @transform_0(%arg0: i32) -> (i32, i32) {
    %c0_i32 = arith.constant 0 : i32
    %c0_i32_0 = arith.constant 0 : i32
    %c0_i32_1 = arith.constant 0 : i32
    return %c0_i32, %c0_i32_0 : i32, i32
  }
  func.func @transform_1(%arg0: i32) -> (i32, i32) {
    %c0_i32 = arith.constant 0 : i32
    %c0_i32_0 = arith.constant 0 : i32
    %c0_i32_1 = arith.constant 0 : i32
    return %c0_i32, %c0_i32_0 : i32, i32
  }
  func.func @transform_2(%arg0: i32) -> (i32, i32) {
    %c0_i32 = arith.constant 0 : i32
    %c0_i32_0 = arith.constant 0 : i32
    %c0_i32_1 = arith.constant 0 : i32
    return %c0_i32, %c0_i32_0 : i32, i32
  }
  func.func @transform_3(%arg0: i32) -> (i32, i32) {
    %c0_i32 = arith.constant 0 : i32
    %c0_i32_0 = arith.constant 0 : i32
    %c0_i32_1 = arith.constant 0 : i32
    return %c0_i32, %c0_i32_0 : i32, i32
  }
  func.func @transform_4(%arg0: i32) -> (i32, i32) {
    %c0_i32 = arith.constant 0 : i32
    %c0_i32_0 = arith.constant 0 : i32
    %c0_i32_1 = arith.constant 0 : i32
    return %c0_i32, %c0_i32_0 : i32, i32
  }
  func.func @transform_5(%arg0: i32) -> (i32, i32) {
    %c0_i32 = arith.constant 0 : i32
    %c0_i32_0 = arith.constant 0 : i32
    %c0_i32_1 = arith.constant 0 : i32
    return %c0_i32, %c0_i32_0 : i32, i32
  }
  func.func @transform_6(%arg0: i32) -> (i32, i32) {
    %c0_i32 = arith.constant 0 : i32
    %c0_i32_0 = arith.constant 0 : i32
    %c0_i32_1 = arith.constant 0 : i32
    return %c0_i32, %c0_i32_0 : i32, i32
  }
  func.func @transform_7(%arg0: i32) -> (i32, i32) {
    %c0_i32 = arith.constant 0 : i32
    %c0_i32_0 = arith.constant 0 : i32
    %c0_i32_1 = arith.constant 0 : i32
    return %c0_i32, %c0_i32_0 : i32, i32
  }
}

</mosaic_0001>

<llo_original>
// kernel: inverted_residual_pallas.1
$region0: #{inverted_residual_pallas.1}
  #allocation0 [shape = 'u32[]', space=smem, size = 0x4, offset = 0x4, fixed_abs, tag = 'smem constant byte address 0x4 - core index']
  #allocation1 [shape = 'u32[72,128]{1,0:T(1,128)}', space=vmem, size = 0x9000, scoped, tag = 'internal scratch']
  %s0 = inlined_call_operand.vmem [shape: f32[256,32], index: 0, kind: input, shape index: {}]
  %s1 = inlined_call_operand.vmem [shape: f32[32,128], index: 1, kind: input, shape index: {}]
  %s2 = inlined_call_operand.vmem [shape: f32[9,128], index: 2, kind: input, shape index: {}]
  %s3 = inlined_call_operand.vmem [shape: f32[128,32], index: 3, kind: input, shape index: {}]
  %s4 = inlined_call_operand.vmem [shape: f32[32,128], index: 4, kind: input, shape index: {}]
  %s5 = inlined_call_operand.vmem [shape: f32[128,32], index: 5, kind: input, shape index: {}]
  %s6 = inlined_call_operand.vmem [shape: f32[8,128], index: 6, kind: input, shape index: {}]
  %s7 = inlined_call_operand.vmem [shape: f32[256,32], index: 7, kind: output, shape index: {}]
  %s8 = sld [smem:[#allocation0]]
  $region38: #{inverted_residual_pallas.1} parent=0
    _
  %s10 = ssub.s32 1, %s8
  %s11 = scalar_select 0, %s10, %s8
  // Predicated region
  $region2: #{inverted_residual_pallas.1} parent=0 // pred_check
    _
  $region3: #{inverted_residual_pallas.1} parent=0 // pred_check_branch
    %13 = sbr.rel (0) target = $region5
  $region4: #{inverted_residual_pallas.1} parent=0 // pred_region
    _
  $region5: #{inverted_residual_pallas.1} parent=0 // pred_fallthru
    _
  // Predicated region
  $region6: #{inverted_residual_pallas.1} parent=0 // pred_check
    _
  $region7: #{inverted_residual_pallas.1} parent=0 // pred_check_branch
    %15 = sbr.rel (0) target = $region9
  $region8: #{inverted_residual_pallas.1} parent=0 // pred_region
    _
  $region9: #{inverted_residual_pallas.1} parent=0 // pred_fallthru
    _
  // Predicated region
  $region10: #{inverted_residual_pallas.1} parent=0 // pred_check
    _
  $region11: #{inverted_residual_pallas.1} parent=0 // pred_check_branch
    %17 = sbr.rel (0) target = $region13
  $region12: #{inverted_residual_pallas.1} parent=0 // pred_region
    _
  $region13: #{inverted_residual_pallas.1} parent=0 // pred_fallthru
    _
  // Predicated region
  $region14: #{inverted_residual_pallas.1} parent=0 // pred_check
    _
  $region15: #{inverted_residual_pallas.1} parent=0 // pred_check_branch
    %19 = sbr.rel (0) target = $region17
  $region16: #{inverted_residual_pallas.1} parent=0 // pred_region
    _
  $region17: #{inverted_residual_pallas.1} parent=0 // pred_fallthru
    _
  // Predicated region
  $region18: #{inverted_residual_pallas.1} parent=0 // pred_check
    _
  $region19: #{inverted_residual_pallas.1} parent=0 // pred_check_branch
    %21 = sbr.rel (0) target = $region21
  $region20: #{inverted_residual_pallas.1} parent=0 // pred_region
    _
  $region21: #{inverted_residual_pallas.1} parent=0 // pred_fallthru
    _
  // Predicated region
  $region22: #{inverted_residual_pallas.1} parent=0 // pred_check
    _
  $region23: #{inverted_residual_pallas.1} parent=0 // pred_check_branch
    %23 = sbr.rel (0) target = $region25
  $region24: #{inverted_residual_pallas.1} parent=0 // pred_region
    _
  $region25: #{inverted_residual_pallas.1} parent=0 // pred_fallthru
    _
  // Predicated region
  $region26: #{inverted_residual_pallas.1} parent=0 // pred_check
    _
  $region27: #{inverted_residual_pallas.1} parent=0 // pred_check_branch
    %25 = sbr.rel (0) target = $region29
  $region28: #{inverted_residual_pallas.1} parent=0 // pred_region
    _
  $region29: #{inverted_residual_pallas.1} parent=0 // pred_fallthru
    _
  %v26 = vld [vmem:[%s0] sm:$0xff]
  %v27 = vld [vmem:[%s0 + $0x8] sm:$0xff]
  %v28 = vld [vmem:[%s0 + $0x10] sm:$0xff]
  %v29 = vld [vmem:[%s0 + $0x18] sm:$0xff]
  %v30 = vld [vmem:[%s0 + $0x20] sm:$0xff]
  %v31 = vld [vmem:[%s0 + $0x28] sm:$0xff]
  %v32 = vld [vmem:[%s0 + $0x30] sm:$0xff]
  %v33 = vld [vmem:[%s0 + $0x38] sm:$0xff]
  %v34 = vld [vmem:[%s0 + $0x40] sm:$0xff]
  %v35 = vld [vmem:[%s0 + $0x48] sm:$0xff]
  %v36 = vld [vmem:[%s0 + $0x50] sm:$0xff]
  %v37 = vld [vmem:[%s0 + $0x58] sm:$0xff]
  %v38 = vld [vmem:[%s0 + $0x60] sm:$0xff]
  %v39 = vld [vmem:[%s0 + $0x68] sm:$0xff]
  %v40 = vld [vmem:[%s0 + $0x70] sm:$0xff]
  %v41 = vld [vmem:[%s0 + $0x78] sm:$0xff]
  %v42 = vld [vmem:[%s0 + $0x80] sm:$0xff]
  %v43 = vld [vmem:[%s0 + $0x88] sm:$0xff]
  %v44 = vld [vmem:[%s0 + $0x90] sm:$0xff]
  %v45 = vld [vmem:[%s0 + $0x98] sm:$0xff]
  %v46 = vld [vmem:[%s0 + $0xa0] sm:$0xff]
  %v47 = vld [vmem:[%s0 + $0xa8] sm:$0xff]
  %v48 = vld [vmem:[%s0 + $0xb0] sm:$0xff]
  %v49 = vld [vmem:[%s0 + $0xb8] sm:$0xff]
  %v50 = vld [vmem:[%s0 + $0xc0] sm:$0xff]
  %v51 = vld [vmem:[%s0 + $0xc8] sm:$0xff]
  %v52 = vld [vmem:[%s0 + $0xd0] sm:$0xff]
  %v53 = vld [vmem:[%s0 + $0xd8] sm:$0xff]
  %v54 = vld [vmem:[%s0 + $0xe0] sm:$0xff]
  %v55 = vld [vmem:[%s0 + $0xe8] sm:$0xff]
  %v56 = vld [vmem:[%s0 + $0xf0] sm:$0xff]
  %v57 = vld [vmem:[%s0 + $0xf8] sm:$0xff]
  %v58 = vld [vmem:[%s6] sm:$0xff]
  %v59 = vld [vmem:[%s1] sm:$0xff]
  %v60 = vld [vmem:[%s1 + $0x8] sm:$0xff]
  %v61 = vld [vmem:[%s1 + $0x10] sm:$0xff]
  %v62 = vld [vmem:[%s1 + $0x18] sm:$0xff]
  %v63 = vperm.slane %v58, 0
  %vm64 = vcmask 261120
  %v66 = vsel %vm64, %v26, 0
  %v69 = vsel %vm64, %v27, 0
  %v72 = vsel %vm64, %v28, 0
  %v75 = vsel %vm64, %v29, 0
  %v78 = vsel %vm64, %v30, 0
  %v81 = vsel %vm64, %v31, 0
  %v84 = vsel %vm64, %v32, 0
  %v87 = vsel %vm64, %v33, 0
  %v90 = vsel %vm64, %v34, 0
  %v93 = vsel %vm64, %v35, 0
  %v96 = vsel %vm64, %v36, 0
  %v99 = vsel %vm64, %v37, 0
  %v102 = vsel %vm64, %v38, 0
  %v105 = vsel %vm64, %v39, 0
  %v108 = vsel %vm64, %v40, 0
  %v111 = vsel %vm64, %v41, 0
  %v114 = vsel %vm64, %v42, 0
  %v117 = vsel %vm64, %v43, 0
  %v120 = vsel %vm64, %v44, 0
  %v123 = vsel %vm64, %v45, 0
  %v126 = vsel %vm64, %v46, 0
  %v129 = vsel %vm64, %v47, 0
  %v132 = vsel %vm64, %v48, 0
  %v135 = vsel %vm64, %v49, 0
  %v138 = vsel %vm64, %v50, 0
  %v141 = vsel %vm64, %v51, 0
  %v144 = vsel %vm64, %v52, 0
  %v147 = vsel %vm64, %v53, 0
  %v150 = vsel %vm64, %v54, 0
  %v153 = vsel %vm64, %v55, 0
  %v156 = vsel %vm64, %v56, 0
  %v159 = vsel %vm64, %v57, 0
  %161 = vmatpush.msra.mxu0 0.0
  %162 = vmatpush.msra.mxu0 0.0
  %163 = vmatpush.msra.mxu0 0.0
  %164 = vmatpush.msra.mxu0 0.0
  %165 = vmatpush.msra.mxu0 0.0
  %166 = vmatpush.msra.mxu0 0.0
  %167 = vmatpush.msra.mxu0 0.0
  %168 = vmatpush.msra.mxu0 0.0
  %169 = vmatpush.msra.mxu0 0.0
  %170 = vmatpush.msra.mxu0 0.0
  %171 = vmatpush.msra.mxu0 0.0
  %172 = vmatpush.msra.mxu0 0.0
  %173 = vmatpush.msra.mxu0 %v62
  %174 = vmatpush.msra.mxu0 %v61
  %175 = vmatpush.msra.mxu0 %v60
  %176 = vmatpush.msra.mxu0 %v59
  %177 = vmatmul.f32.gmra.mxu0 %v66
  %v178 = vpop.f32.mrf.mxu0
  %v179 = vadd.f32 %v63, %v178
  %180 = vmatmul.f32.gmra.mxu0 %v69
  %v181 = vpop.f32.mrf.mxu0
  %v182 = vadd.f32 %v63, %v181
  %183 = vmatmul.f32.gmra.mxu0 %v72
  %v184 = vpop.f32.mrf.mxu0
  %v185 = vadd.f32 %v63, %v184
  %186 = vmatmul.f32.gmra.mxu0 %v75
  %v187 = vpop.f32.mrf.mxu0
  %v188 = vadd.f32 %v63, %v187
  %189 = vmatmul.f32.gmra.mxu0 %v78
  %v190 = vpop.f32.mrf.mxu0
  %v191 = vadd.f32 %v63, %v190
  %192 = vmatmul.f32.gmra.mxu0 %v81
  %v193 = vpop.f32.mrf.mxu0
  %v194 = vadd.f32 %v63, %v193
  %195 = vmatmul.f32.gmra.mxu0 %v84
  %v196 = vpop.f32.mrf.mxu0
  %v197 = vadd.f32 %v63, %v196
  %198 = vmatmul.f32.gmra.mxu0 %v87
  %v199 = vpop.f32.mrf.mxu0
  %v200 = vadd.f32 %v63, %v199
  %201 = vmatmul.f32.gmra.mxu0 %v90
  %v202 = vpop.f32.mrf.mxu0
  %v203 = vadd.f32 %v63, %v202
  %204 = vmatmul.f32.gmra.mxu0 %v93
  %v205 = vpop.f32.mrf.mxu0
  %v206 = vadd.f32 %v63, %v205
  %207 = vmatmul.f32.gmra.mxu0 %v96
  %v208 = vpop.f32.mrf.mxu0
  %v209 = vadd.f32 %v63, %v208
  %210 = vmatmul.f32.gmra.mxu0 %v99
  %v211 = vpop.f32.mrf.mxu0
  %v212 = vadd.f32 %v63, %v211
  %213 = vmatmul.f32.gmra.mxu0 %v102
  %v214 = vpop.f32.mrf.mxu0
  %v215 = vadd.f32 %v63, %v214
  %216 = vmatmul.f32.gmra.mxu0 %v105
  %v217 = vpop.f32.mrf.mxu0
  %v218 = vadd.f32 %v63, %v217
  %219 = vmatmul.f32.gmra.mxu0 %v108
  %v220 = vpop.f32.mrf.mxu0
  %v221 = vadd.f32 %v63, %v220
  %222 = vmatmul.f32.gmra.mxu0 %v111
  %v223 = vpop.f32.mrf.mxu0
  %v224 = vadd.f32 %v63, %v223
  %225 = vmatmul.f32.gmra.mxu0 %v114
  %v226 = vpop.f32.mrf.mxu0
  %v227 = vadd.f32 %v63, %v226
  %228 = vmatmul.f32.gmra.mxu0 %v117
  %v229 = vpop.f32.mrf.mxu0
  %v230 = vadd.f32 %v63, %v229
  %231 = vmatmul.f32.gmra.mxu0 %v120
  %v232 = vpop.f32.mrf.mxu0
  %v233 = vadd.f32 %v63, %v232
  %234 = vmatmul.f32.gmra.mxu0 %v123
  %v235 = vpop.f32.mrf.mxu0
  %v236 = vadd.f32 %v63, %v235
  %237 = vmatmul.f32.gmra.mxu0 %v126
  %v238 = vpop.f32.mrf.mxu0
  %v239 = vadd.f32 %v63, %v238
  %240 = vmatmul.f32.gmra.mxu0 %v129
  %v241 = vpop.f32.mrf.mxu0
  %v242 = vadd.f32 %v63, %v241
  %243 = vmatmul.f32.gmra.mxu0 %v132
  %v244 = vpop.f32.mrf.mxu0
  %v245 = vadd.f32 %v63, %v244
  %246 = vmatmul.f32.gmra.mxu0 %v135
  %v247 = vpop.f32.mrf.mxu0
  %v248 = vadd.f32 %v63, %v247
  %249 = vmatmul.f32.gmra.mxu0 %v138
  %v250 = vpop.f32.mrf.mxu0
  %v251 = vadd.f32 %v63, %v250
  %252 = vmatmul.f32.gmra.mxu0 %v141
  %v253 = vpop.f32.mrf.mxu0
  %v254 = vadd.f32 %v63, %v253
  %255 = vmatmul.f32.gmra.mxu0 %v144
  %v256 = vpop.f32.mrf.mxu0
  %v257 = vadd.f32 %v63, %v256
  %258 = vmatmul.f32.gmra.mxu0 %v147
  %v259 = vpop.f32.mrf.mxu0
  %v260 = vadd.f32 %v63, %v259
  %261 = vmatmul.f32.gmra.mxu0 %v150
  %v262 = vpop.f32.mrf.mxu0
  %v263 = vadd.f32 %v63, %v262
  %264 = vmatmul.f32.gmra.mxu0 %v153
  %v265 = vpop.f32.mrf.mxu0
  %v266 = vadd.f32 %v63, %v265
  %267 = vmatmul.f32.gmra.mxu0 %v156
  %v268 = vpop.f32.mrf.mxu0
  %v269 = vadd.f32 %v63, %v268
  %270 = vmatmul.f32.gmra.mxu0 %v159
  %v271 = vpop.f32.mrf.mxu0
  %v272 = vadd.f32 %v63, %v271
  %273 = vdwg.mxu0
  %v274 = vadd.f32 %v179, 3.0
  %v275 = vadd.f32 %v182, 3.0
  %v276 = vadd.f32 %v185, 3.0
  %v277 = vadd.f32 %v188, 3.0
  %v278 = vadd.f32 %v191, 3.0
  %v279 = vadd.f32 %v194, 3.0
  %v280 = vadd.f32 %v197, 3.0
  %v281 = vadd.f32 %v200, 3.0
  %v282 = vadd.f32 %v203, 3.0
  %v283 = vadd.f32 %v206, 3.0
  %v284 = vadd.f32 %v209, 3.0
  %v285 = vadd.f32 %v212, 3.0
  %v286 = vadd.f32 %v215, 3.0
  %v287 = vadd.f32 %v218, 3.0
  %v288 = vadd.f32 %v221, 3.0
  %v289 = vadd.f32 %v224, 3.0
  %v290 = vadd.f32 %v227, 3.0
  %v291 = vadd.f32 %v230, 3.0
  %v292 = vadd.f32 %v233, 3.0
  %v293 = vadd.f32 %v236, 3.0
  %v294 = vadd.f32 %v239, 3.0
  %v295 = vadd.f32 %v242, 3.0
  %v296 = vadd.f32 %v245, 3.0
  %v297 = vadd.f32 %v248, 3.0
  %v298 = vadd.f32 %v251, 3.0
  %v299 = vadd.f32 %v254, 3.0
  %v300 = vadd.f32 %v257, 3.0
  %v301 = vadd.f32 %v260, 3.0
  %v302 = vadd.f32 %v263, 3.0
  %v303 = vadd.f32 %v266, 3.0
  %v304 = vadd.f32 %v269, 3.0
  %v305 = vadd.f32 %v272, 3.0
  %v306 = vmax.f32 %v274, 0.0
  %v307 = vmax.f32 %v275, 0.0
  %v308 = vmax.f32 %v276, 0.0
  %v309 = vmax.f32 %v277, 0.0
  %v310 = vmax.f32 %v278, 0.0
  %v311 = vmax.f32 %v279, 0.0
  %v312 = vmax.f32 %v280, 0.0
  %v313 = vmax.f32 %v281, 0.0
  %v314 = vmax.f32 %v282, 0.0
  %v315 = vmax.f32 %v283, 0.0
  %v316 = vmax.f32 %v284, 0.0
  %v317 = vmax.f32 %v285, 0.0
  %v318 = vmax.f32 %v286, 0.0
  %v319 = vmax.f32 %v287, 0.0
  %v320 = vmax.f32 %v288, 0.0
  %v321 = vmax.f32 %v289, 0.0
  %v322 = vmax.f32 %v290, 0.0
  %v323 = vmax.f32 %v291, 0.0
  %v324 = vmax.f32 %v292, 0.0
  %v325 = vmax.f32 %v293, 0.0
  %v326 = vmax.f32 %v294, 0.0
  %v327 = vmax.f32 %v295, 0.0
  %v328 = vmax.f32 %v296, 0.0
  %v329 = vmax.f32 %v297, 0.0
  %v330 = vmax.f32 %v298, 0.0
  %v331 = vmax.f32 %v299, 0.0
  %v332 = vmax.f32 %v300, 0.0
  %v333 = vmax.f32 %v301, 0.0
  %v334 = vmax.f32 %v302, 0.0
  %v335 = vmax.f32 %v303, 0.0
  %v336 = vmax.f32 %v304, 0.0
  %v337 = vmax.f32 %v305, 0.0
  %v338 = vmin.f32 %v306, 6.0
  %v339 = vmin.f32 %v307, 6.0
  %v340 = vmin.f32 %v308, 6.0
  %v341 = vmin.f32 %v309, 6.0
  %v342 = vmin.f32 %v310, 6.0
  %v343 = vmin.f32 %v311, 6.0
  %v344 = vmin.f32 %v312, 6.0
  %v345 = vmin.f32 %v313, 6.0
  %v346 = vmin.f32 %v314, 6.0
  %v347 = vmin.f32 %v315, 6.0
  %v348 = vmin.f32 %v316, 6.0
  %v349 = vmin.f32 %v317, 6.0
  %v350 = vmin.f32 %v318, 6.0
  %v351 = vmin.f32 %v319, 6.0
  %v352 = vmin.f32 %v320, 6.0
  %v353 = vmin.f32 %v321, 6.0
  %v354 = vmin.f32 %v322, 6.0
  %v355 = vmin.f32 %v323, 6.0
  %v356 = vmin.f32 %v324, 6.0
  %v357 = vmin.f32 %v325, 6.0
  %v358 = vmin.f32 %v326, 6.0
  %v359 = vmin.f32 %v327, 6.0
  %v360 = vmin.f32 %v328, 6.0
  %v361 = vmin.f32 %v329, 6.0
  %v362 = vmin.f32 %v330, 6.0
  %v363 = vmin.f32 %v331, 6.0
  %v364 = vmin.f32 %v332, 6.0
  %v365 = vmin.f32 %v333, 6.0
  %v366 = vmin.f32 %v334, 6.0
  %v367 = vmin.f32 %v335, 6.0
  %v368 = vmin.f32 %v336, 6.0
  %v369 = vmin.f32 %v337, 6.0
  %v370 = vmul.f32 %v179, %v338
  %v371 = vmul.f32 %v182, %v339
  %v372 = vmul.f32 %v185, %v340
  %v373 = vmul.f32 %v188, %v341
  %v374 = vmul.f32 %v191, %v342
  %v375 = vmul.f32 %v194, %v343
  %v376 = vmul.f32 %v197, %v344
  %v377 = vmul.f32 %v200, %v345
  %v378 = vmul.f32 %v203, %v346
  %v379 = vmul.f32 %v206, %v347
  %v380 = vmul.f32 %v209, %v348
  %v381 = vmul.f32 %v212, %v349
  %v382 = vmul.f32 %v215, %v350
  %v383 = vmul.f32 %v218, %v351
  %v384 = vmul.f32 %v221, %v352
  %v385 = vmul.f32 %v224, %v353
  %v386 = vmul.f32 %v227, %v354
  %v387 = vmul.f32 %v230, %v355
  %v388 = vmul.f32 %v233, %v356
  %v389 = vmul.f32 %v236, %v357
  %v390 = vmul.f32 %v239, %v358
  %v391 = vmul.f32 %v242, %v359
  %v392 = vmul.f32 %v245, %v360
  %v393 = vmul.f32 %v248, %v361
  %v394 = vmul.f32 %v251, %v362
  %v395 = vmul.f32 %v254, %v363
  %v396 = vmul.f32 %v257, %v364
  %v397 = vmul.f32 %v260, %v365
  %v398 = vmul.f32 %v263, %v366
  %v399 = vmul.f32 %v266, %v367
  %v400 = vmul.f32 %v269, %v368
  %v401 = vmul.f32 %v272, %v369
  %v402 = vmul.f32 %v370, 0.16666667
  %v403 = vmul.f32 %v371, 0.16666667
  %v404 = vmul.f32 %v372, 0.16666667
  %v405 = vmul.f32 %v373, 0.16666667
  %v406 = vmul.f32 %v374, 0.16666667
  %v407 = vmul.f32 %v375, 0.16666667
  %v408 = vmul.f32 %v376, 0.16666667
  %v409 = vmul.f32 %v377, 0.16666667
  %v410 = vmul.f32 %v378, 0.16666667
  %v411 = vmul.f32 %v379, 0.16666667
  %v412 = vmul.f32 %v380, 0.16666667
  %v413 = vmul.f32 %v381, 0.16666667
  %v414 = vmul.f32 %v382, 0.16666667
  %v415 = vmul.f32 %v383, 0.16666667
  %v416 = vmul.f32 %v384, 0.16666667
  %v417 = vmul.f32 %v385, 0.16666667
  %v418 = vmul.f32 %v386, 0.16666667
  %v419 = vmul.f32 %v387, 0.16666667
  %v420 = vmul.f32 %v388, 0.16666667
  %v421 = vmul.f32 %v389, 0.16666667
  %v422 = vmul.f32 %v390, 0.16666667
  %v423 = vmul.f32 %v391, 0.16666667
  %v424 = vmul.f32 %v392, 0.16666667
  %v425 = vmul.f32 %v393, 0.16666667
  %v426 = vmul.f32 %v394, 0.16666667
  %v427 = vmul.f32 %v395, 0.16666667
  %v428 = vmul.f32 %v396, 0.16666667
  %v429 = vmul.f32 %v397, 0.16666667
  %v430 = vmul.f32 %v398, 0.16666667
  %v431 = vmul.f32 %v399, 0.16666667
  %v432 = vmul.f32 %v400, 0.16666667
  %v433 = vmul.f32 %v401, 0.16666667
  %v434 = vld [vmem:[%s2] sm:$0xff]
  %v435 = vld [vmem:[%s2 + $0x8] sm:$0x1]
  %v436 = vlaneseq
  %v437 = vshrl.u32 %v436, 7
  %v438 = vadd.s32 %v437, 8
  %vm439 = vcmp.ge.s32.totalorder %v437, 1
  %vm440 = vcmp.ge.s32.totalorder %v438, 1
  %v441 = vsel %vm439, 1, 0
  %v442 = vsel %vm440, 1, 0
  %v443 = vcvt.s32.f32 %v441
  %v444 = vcvt.s32.f32 %v442
  %vm445 = vcmp.le.s32.totalorder %v437, 14
  %vm446 = vcmp.le.s32.totalorder %v438, 14
  %v447 = vsel %vm445, 1, 0
  %v448 = vsel %vm446, 1, 0
  %v449 = vcvt.s32.f32 %v447
  %v450 = vcvt.s32.f32 %v448
  %v451 = vrot.slane %v402, 7
  %v452 = vrot.slane %v403, 7
  %v453 = vrot.slane %v404, 7
  %v454 = vrot.slane %v405, 7
  %v455 = vrot.slane %v406, 7
  %v456 = vrot.slane %v407, 7
  %v457 = vrot.slane %v408, 7
  %v458 = vrot.slane %v409, 7
  %v459 = vrot.slane %v410, 7
  %v460 = vrot.slane %v411, 7
  %v461 = vrot.slane %v412, 7
  %v462 = vrot.slane %v413, 7
  %v463 = vrot.slane %v414, 7
  %v464 = vrot.slane %v415, 7
  %v465 = vrot.slane %v416, 7
  %v466 = vrot.slane %v417, 7
  %v467 = vrot.slane %v418, 7
  %v468 = vrot.slane %v419, 7
  %v469 = vrot.slane %v420, 7
  %v470 = vrot.slane %v421, 7
  %v471 = vrot.slane %v422, 7
  %v472 = vrot.slane %v423, 7
  %v473 = vrot.slane %v424, 7
  %v474 = vrot.slane %v425, 7
  %v475 = vrot.slane %v426, 7
  %v476 = vrot.slane %v427, 7
  %v477 = vrot.slane %v428, 7
  %v478 = vrot.slane %v429, 7
  %v479 = vrot.slane %v430, 7
  %v480 = vrot.slane %v431, 7
  %vm481 = vcmp.lt.s32.totalorder %v437, 1
  %v482 = vsel %vm481, %v479, %v480
  %v483 = vsel %vm481, %v478, %v479
  %v484 = vsel %vm481, %v477, %v478
  %v485 = vsel %vm481, %v476, %v477
  %v486 = vsel %vm481, %v475, %v476
  %v487 = vsel %vm481, %v474, %v475
  %v488 = vsel %vm481, %v473, %v474
  %v489 = vsel %vm481, %v472, %v473
  %v490 = vsel %vm481, %v471, %v472
  %v491 = vsel %vm481, %v470, %v471
  %v492 = vsel %vm481, %v469, %v470
  %v493 = vsel %vm481, %v468, %v469
  %v494 = vsel %vm481, %v467, %v468
  %v495 = vsel %vm481, %v466, %v467
  %v496 = vsel %vm481, %v465, %v466
  %v497 = vsel %vm481, %v464, %v465
  %v498 = vsel %vm481, %v463, %v464
  %v499 = vsel %vm481, %v462, %v463
  %v500 = vsel %vm481, %v461, %v462
  %v501 = vsel %vm481, %v460, %v461
  %v502 = vsel %vm481, %v459, %v460
  %v503 = vsel %vm481, %v458, %v459
  %v504 = vsel %vm481, %v457, %v458
  %v505 = vsel %vm481, %v456, %v457
  %v506 = vsel %vm481, %v455, %v456
  %v507 = vsel %vm481, %v454, %v455
  %v508 = vsel %vm481, %v453, %v454
  %v509 = vsel %vm481, %v452, %v453
  %v510 = vsel %vm481, %v451, %v452
  %v511 = vsel %vm481, 0.0, %v451
  %v512 = vsel %vm481, %v480, 0.0
  %v513 = vrot.slane %v402, 1
  %v514 = vrot.slane %v403, 1
  %v515 = vrot.slane %v404, 1
  %v516 = vrot.slane %v405, 1
  %v517 = vrot.slane %v406, 1
  %v518 = vrot.slane %v407, 1
  %v519 = vrot.slane %v408, 1
  %v520 = vrot.slane %v409, 1
  %v521 = vrot.slane %v410, 1
  %v522 = vrot.slane %v411, 1
  %v523 = vrot.slane %v412, 1
  %v524 = vrot.slane %v413, 1
  %v525 = vrot.slane %v414, 1
  %v526 = vrot.slane %v415, 1
  %v527 = vrot.slane %v416, 1
  %v528 = vrot.slane %v417, 1
  %v529 = vrot.slane %v418, 1
  %v530 = vrot.slane %v419, 1
  %v531 = vrot.slane %v420, 1
  %v532 = vrot.slane %v421, 1
  %v533 = vrot.slane %v422, 1
  %v534 = vrot.slane %v423, 1
  %v535 = vrot.slane %v424, 1
  %v536 = vrot.slane %v425, 1
  %v537 = vrot.slane %v426, 1
  %v538 = vrot.slane %v427, 1
  %v539 = vrot.slane %v428, 1
  %v540 = vrot.slane %v429, 1
  %v541 = vrot.slane %v430, 1
  %v542 = vrot.slane %v431, 1
  %vm543 = vcmp.lt.s32.totalorder %v437, 7
  %v544 = vsel %vm543, %v541, %v542
  %v545 = vsel %vm543, %v540, %v541
  %v546 = vsel %vm543, %v539, %v540
  %v547 = vsel %vm543, %v538, %v539
  %v548 = vsel %vm543, %v537, %v538
  %v549 = vsel %vm543, %v536, %v537
  %v550 = vsel %vm543, %v535, %v536
  %v551 = vsel %vm543, %v534, %v535
  %v552 = vsel %vm543, %v533, %v534
  %v553 = vsel %vm543, %v532, %v533
  %v554 = vsel %vm543, %v531, %v532
  %v555 = vsel %vm543, %v530, %v531
  %v556 = vsel %vm543, %v529, %v530
  %v557 = vsel %vm543, %v528, %v529
  %v558 = vsel %vm543, %v527, %v528
  %v559 = vsel %vm543, %v526, %v527
  %v560 = vsel %vm543, %v525, %v526
  %v561 = vsel %vm543, %v524, %v525
  %v562 = vsel %vm543, %v523, %v524
  %v563 = vsel %vm543, %v522, %v523
  %v564 = vsel %vm543, %v521, %v522
  %v565 = vsel %vm543, %v520, %v521
  %v566 = vsel %vm543, %v519, %v520
  %v567 = vsel %vm543, %v518, %v519
  %v568 = vsel %vm543, %v517, %v518
  %v569 = vsel %vm543, %v516, %v517
  %v570 = vsel %vm543, %v515, %v516
  %v571 = vsel %vm543, %v514, %v515
  %v572 = vsel %vm543, %v513, %v514
  %v573 = vsel %vm543, 0.0, %v513
  %v574 = vsel %vm543, %v542, 0.0
  %v575 = vperm.slane %v434, 0
  %v576 = vmul.f32 %v443, %v575
  %v577 = vmul.f32 %v444, %v575
  %v578 = vmul.f32 %v512, %v576
  %v579 = vmul.f32 0.0, %v577
  %v580 = vmul.f32 %v511, %v576
  %v581 = vmul.f32 %v510, %v577
  %v582 = vmul.f32 %v509, %v576
  %v583 = vmul.f32 %v508, %v577
  %v584 = vmul.f32 %v507, %v576
  %v585 = vmul.f32 %v506, %v577
  %v586 = vmul.f32 %v505, %v576
  %v587 = vmul.f32 %v504, %v577
  %v588 = vmul.f32 %v503, %v576
  %v589 = vmul.f32 %v502, %v577
  %v590 = vmul.f32 %v501, %v576
  %v591 = vmul.f32 %v500, %v577
  %v592 = vmul.f32 %v499, %v576
  %v593 = vmul.f32 %v498, %v577
  %v594 = vmul.f32 %v497, %v576
  %v595 = vmul.f32 %v496, %v577
  %v596 = vmul.f32 %v495, %v576
  %v597 = vmul.f32 %v494, %v577
  %v598 = vmul.f32 %v493, %v576
  %v599 = vmul.f32 %v492, %v577
  %v600 = vmul.f32 %v491, %v576
  %v601 = vmul.f32 %v490, %v577
  %v602 = vmul.f32 %v489, %v576
  %v603 = vmul.f32 %v488, %v577
  %v604 = vmul.f32 %v487, %v576
  %v605 = vmul.f32 %v486, %v577
  %v606 = vmul.f32 %v485, %v576
  %v607 = vmul.f32 %v484, %v577
  %v608 = vmul.f32 %v483, %v576
  %v609 = vmul.f32 %v482, %v577
  %v610 = vadd.f32 %v578, 0.0
  %v611 = vadd.f32 %v579, 0.0
  %v612 = vadd.f32 %v580, 0.0
  %v613 = vadd.f32 %v581, 0.0
  %v614 = vadd.f32 %v582, 0.0
  %v615 = vadd.f32 %v583, 0.0
  %v616 = vadd.f32 %v584, 0.0
  %v617 = vadd.f32 %v585, 0.0
  %v618 = vadd.f32 %v586, 0.0
  %v619 = vadd.f32 %v587, 0.0
  %v620 = vadd.f32 %v588, 0.0
  %v621 = vadd.f32 %v589, 0.0
  %v622 = vadd.f32 %v590, 0.0
  %v623 = vadd.f32 %v591, 0.0
  %v624 = vadd.f32 %v592, 0.0
  %v625 = vadd.f32 %v593, 0.0
  %v626 = vadd.f32 %v594, 0.0
  %v627 = vadd.f32 %v595, 0.0
  %v628 = vadd.f32 %v596, 0.0
  %v629 = vadd.f32 %v597, 0.0
  %v630 = vadd.f32 %v598, 0.0
  %v631 = vadd.f32 %v599, 0.0
  %v632 = vadd.f32 %v600, 0.0
  %v633 = vadd.f32 %v601, 0.0
  %v634 = vadd.f32 %v602, 0.0
  %v635 = vadd.f32 %v603, 0.0
  %v636 = vadd.f32 %v604, 0.0
  %v637 = vadd.f32 %v605, 0.0
  %v638 = vadd.f32 %v606, 0.0
  %v639 = vadd.f32 %v607, 0.0
  %v640 = vadd.f32 %v608, 0.0
  %v641 = vadd.f32 %v609, 0.0
  %v642 = vperm.slane %v434, 1
  %v643 = vmul.f32 %v642, 0.0
  %v644 = vmul.f32 %v402, %v642
  %v645 = vmul.f32 %v403, %v642
  %v646 = vmul.f32 %v404, %v642
  %v647 = vmul.f32 %v405, %v642
  %v648 = vmul.f32 %v406, %v642
  %v649 = vmul.f32 %v407, %v642
  %v650 = vmul.f32 %v408, %v642
  %v651 = vmul.f32 %v409, %v642
  %v652 = vmul.f32 %v410, %v642
  %v653 = vmul.f32 %v411, %v642
  %v654 = vmul.f32 %v412, %v642
  %v655 = vmul.f32 %v413, %v642
  %v656 = vmul.f32 %v414, %v642
  %v657 = vmul.f32 %v415, %v642
  %v658 = vmul.f32 %v416, %v642
  %v659 = vmul.f32 %v417, %v642
  %v660 = vmul.f32 %v418, %v642
  %v661 = vmul.f32 %v419, %v642
  %v662 = vmul.f32 %v420, %v642
  %v663 = vmul.f32 %v421, %v642
  %v664 = vmul.f32 %v422, %v642
  %v665 = vmul.f32 %v423, %v642
  %v666 = vmul.f32 %v424, %v642
  %v667 = vmul.f32 %v425, %v642
  %v668 = vmul.f32 %v426, %v642
  %v669 = vmul.f32 %v427, %v642
  %v670 = vmul.f32 %v428, %v642
  %v671 = vmul.f32 %v429, %v642
  %v672 = vmul.f32 %v430, %v642
  %v673 = vmul.f32 %v431, %v642
  %v674 = vadd.f32 %v610, %v643
  %v675 = vadd.f32 %v611, %v643
  %v676 = vadd.f32 %v612, %v644
  %v677 = vadd.f32 %v613, %v645
  %v678 = vadd.f32 %v614, %v646
  %v679 = vadd.f32 %v615, %v647
  %v680 = vadd.f32 %v616, %v648
  %v681 = vadd.f32 %v617, %v649
  %v682 = vadd.f32 %v618, %v650
  %v683 = vadd.f32 %v619, %v651
  %v684 = vadd.f32 %v620, %v652
  %v685 = vadd.f32 %v621, %v653
  %v686 = vadd.f32 %v622, %v654
  %v687 = vadd.f32 %v623, %v655
  %v688 = vadd.f32 %v624, %v656
  %v689 = vadd.f32 %v625, %v657
  %v690 = vadd.f32 %v626, %v658
  %v691 = vadd.f32 %v627, %v659
  %v692 = vadd.f32 %v628, %v660
  %v693 = vadd.f32 %v629, %v661
  %v694 = vadd.f32 %v630, %v662
  %v695 = vadd.f32 %v631, %v663
  %v696 = vadd.f32 %v632, %v664
  %v697 = vadd.f32 %v633, %v665
  %v698 = vadd.f32 %v634, %v666
  %v699 = vadd.f32 %v635, %v667
  %v700 = vadd.f32 %v636, %v668
  %v701 = vadd.f32 %v637, %v669
  %v702 = vadd.f32 %v638, %v670
  %v703 = vadd.f32 %v639, %v671
  %v704 = vadd.f32 %v640, %v672
  %v705 = vadd.f32 %v641, %v673
  %v706 = vperm.slane %v434, 2
  %v707 = vmul.f32 %v449, %v706
  %v708 = vmul.f32 %v450, %v706
  %v709 = vmul.f32 0.0, %v707
  %v710 = vmul.f32 %v573, %v708
  %v711 = vmul.f32 %v572, %v707
  %v712 = vmul.f32 %v571, %v708
  %v713 = vmul.f32 %v570, %v707
  %v714 = vmul.f32 %v569, %v708
  %v715 = vmul.f32 %v568, %v707
  %v716 = vmul.f32 %v567, %v708
  %v717 = vmul.f32 %v566, %v707
  %v718 = vmul.f32 %v565, %v708
  %v719 = vmul.f32 %v564, %v707
  %v720 = vmul.f32 %v563, %v708
  %v721 = vmul.f32 %v562, %v707
  %v722 = vmul.f32 %v561, %v708
  %v723 = vmul.f32 %v560, %v707
  %v724 = vmul.f32 %v559, %v708
  %v725 = vmul.f32 %v558, %v707
  %v726 = vmul.f32 %v557, %v708
  %v727 = vmul.f32 %v556, %v707
  %v728 = vmul.f32 %v555, %v708
  %v729 = vmul.f32 %v554, %v707
  %v730 = vmul.f32 %v553, %v708
  %v731 = vmul.f32 %v552, %v707
  %v732 = vmul.f32 %v551, %v708
  %v733 = vmul.f32 %v550, %v707
  %v734 = vmul.f32 %v549, %v708
  %v735 = vmul.f32 %v548, %v707
  %v736 = vmul.f32 %v547, %v708
  %v737 = vmul.f32 %v546, %v707
  %v738 = vmul.f32 %v545, %v708
  %v739 = vmul.f32 %v544, %v707
  %v740 = vmul.f32 %v574, %v708
  %v741 = vadd.f32 %v674, %v709
  %v742 = vadd.f32 %v675, %v710
  %v743 = vadd.f32 %v676, %v711
  %v744 = vadd.f32 %v677, %v712
  %v745 = vadd.f32 %v678, %v713
  %v746 = vadd.f32 %v679, %v714
  %v747 = vadd.f32 %v680, %v715
  %v748 = vadd.f32 %v681, %v716
  %v749 = vadd.f32 %v682, %v717
  %v750 = vadd.f32 %v683, %v718
  %v751 = vadd.f32 %v684, %v719
  %v752 = vadd.f32 %v685, %v720
  %v753 = vadd.f32 %v686, %v721
  %v754 = vadd.f32 %v687, %v722
  %v755 = vadd.f32 %v688, %v723
  %v756 = vadd.f32 %v689, %v724
  %v757 = vadd.f32 %v690, %v725
  %v758 = vadd.f32 %v691, %v726
  %v759 = vadd.f32 %v692, %v727
  %v760 = vadd.f32 %v693, %v728
  %v761 = vadd.f32 %v694, %v729
  %v762 = vadd.f32 %v695, %v730
  %v763 = vadd.f32 %v696, %v731
  %v764 = vadd.f32 %v697, %v732
  %v765 = vadd.f32 %v698, %v733
  %v766 = vadd.f32 %v699, %v734
  %v767 = vadd.f32 %v700, %v735
  %v768 = vadd.f32 %v701, %v736
  %v769 = vadd.f32 %v702, %v737
  %v770 = vadd.f32 %v703, %v738
  %v771 = vadd.f32 %v704, %v739
  %v772 = vadd.f32 %v705, %v740
  %v773 = vrot.slane %v432, 7
  %v774 = vrot.slane %v433, 7
  %v775 = vsel %vm481, %v773, %v774
  %v776 = vsel %vm481, %v480, %v773
  %v777 = vsel %vm481, %v774, %v451
  %v778 = vrot.slane %v432, 1
  %v779 = vrot.slane %v433, 1
  %v780 = vsel %vm543, %v778, %v779
  %v781 = vsel %vm543, %v542, %v778
  %v782 = vsel %vm543, %v779, %v513
  %v783 = vperm.slane %v434, 3
  %v784 = vmul.f32 %v443, %v783
  %v785 = vmul.f32 %v444, %v783
  %v786 = vmul.f32 %v777, %v784
  %v787 = vmul.f32 %v510, %v785
  %v788 = vmul.f32 %v509, %v784
  %v789 = vmul.f32 %v508, %v785
  %v790 = vmul.f32 %v507, %v784
  %v791 = vmul.f32 %v506, %v785
  %v792 = vmul.f32 %v505, %v784
  %v793 = vmul.f32 %v504, %v785
  %v794 = vmul.f32 %v503, %v784
  %v795 = vmul.f32 %v502, %v785
  %v796 = vmul.f32 %v501, %v784
  %v797 = vmul.f32 %v500, %v785
  %v798 = vmul.f32 %v499, %v784
  %v799 = vmul.f32 %v498, %v785
  %v800 = vmul.f32 %v497, %v784
  %v801 = vmul.f32 %v496, %v785
  %v802 = vmul.f32 %v495, %v784
  %v803 = vmul.f32 %v494, %v785
  %v804 = vmul.f32 %v493, %v784
  %v805 = vmul.f32 %v492, %v785
  %v806 = vmul.f32 %v491, %v784
  %v807 = vmul.f32 %v490, %v785
  %v808 = vmul.f32 %v489, %v784
  %v809 = vmul.f32 %v488, %v785
  %v810 = vmul.f32 %v487, %v784
  %v811 = vmul.f32 %v486, %v785
  %v812 = vmul.f32 %v485, %v784
  %v813 = vmul.f32 %v484, %v785
  %v814 = vmul.f32 %v483, %v784
  %v815 = vmul.f32 %v482, %v785
  %v816 = vmul.f32 %v776, %v784
  %v817 = vmul.f32 %v775, %v785
  %v818 = vadd.f32 %v741, %v786
  %v819 = vadd.f32 %v742, %v787
  %v820 = vadd.f32 %v743, %v788
  %v821 = vadd.f32 %v744, %v789
  %v822 = vadd.f32 %v745, %v790
  %v823 = vadd.f32 %v746, %v791
  %v824 = vadd.f32 %v747, %v792
  %v825 = vadd.f32 %v748, %v793
  %v826 = vadd.f32 %v749, %v794
  %v827 = vadd.f32 %v750, %v795
  %v828 = vadd.f32 %v751, %v796
  %v829 = vadd.f32 %v752, %v797
  %v830 = vadd.f32 %v753, %v798
  %v831 = vadd.f32 %v754, %v799
  %v832 = vadd.f32 %v755, %v800
  %v833 = vadd.f32 %v756, %v801
  %v834 = vadd.f32 %v757, %v802
  %v835 = vadd.f32 %v758, %v803
  %v836 = vadd.f32 %v759, %v804
  %v837 = vadd.f32 %v760, %v805
  %v838 = vadd.f32 %v761, %v806
  %v839 = vadd.f32 %v762, %v807
  %v840 = vadd.f32 %v763, %v808
  %v841 = vadd.f32 %v764, %v809
  %v842 = vadd.f32 %v765, %v810
  %v843 = vadd.f32 %v766, %v811
  %v844 = vadd.f32 %v767, %v812
  %v845 = vadd.f32 %v768, %v813
  %v846 = vadd.f32 %v769, %v814
  %v847 = vadd.f32 %v770, %v815
  %v848 = vadd.f32 %v771, %v816
  %v849 = vadd.f32 %v772, %v817
  %v850 = vperm.slane %v434, 4
  %v851 = vmul.f32 %v402, %v850
  %v852 = vmul.f32 %v403, %v850
  %v853 = vmul.f32 %v404, %v850
  %v854 = vmul.f32 %v405, %v850
  %v855 = vmul.f32 %v406, %v850
  %v856 = vmul.f32 %v407, %v850
  %v857 = vmul.f32 %v408, %v850
  %v858 = vmul.f32 %v409, %v850
  %v859 = vmul.f32 %v410, %v850
  %v860 = vmul.f32 %v411, %v850
  %v861 = vmul.f32 %v412, %v850
  %v862 = vmul.f32 %v413, %v850
  %v863 = vmul.f32 %v414, %v850
  %v864 = vmul.f32 %v415, %v850
  %v865 = vmul.f32 %v416, %v850
  %v866 = vmul.f32 %v417, %v850
  %v867 = vmul.f32 %v418, %v850
  %v868 = vmul.f32 %v419, %v850
  %v869 = vmul.f32 %v420, %v850
  %v870 = vmul.f32 %v421, %v850
  %v871 = vmul.f32 %v422, %v850
  %v872 = vmul.f32 %v423, %v850
  %v873 = vmul.f32 %v424, %v850
  %v874 = vmul.f32 %v425, %v850
  %v875 = vmul.f32 %v426, %v850
  %v876 = vmul.f32 %v427, %v850
  %v877 = vmul.f32 %v428, %v850
  %v878 = vmul.f32 %v429, %v850
  %v879 = vmul.f32 %v430, %v850
  %v880 = vmul.f32 %v431, %v850
  %v881 = vmul.f32 %v432, %v850
  %v882 = vmul.f32 %v433, %v850
  %v883 = vadd.f32 %v818, %v851
  %v884 = vadd.f32 %v819, %v852
  %v885 = vadd.f32 %v820, %v853
  %v886 = vadd.f32 %v821, %v854
  %v887 = vadd.f32 %v822, %v855
  %v888 = vadd.f32 %v823, %v856
  %v889 = vadd.f32 %v824, %v857
  %v890 = vadd.f32 %v825, %v858
  %v891 = vadd.f32 %v826, %v859
  %v892 = vadd.f32 %v827, %v860
  %v893 = vadd.f32 %v828, %v861
  %v894 = vadd.f32 %v829, %v862
  %v895 = vadd.f32 %v830, %v863
  %v896 = vadd.f32 %v831, %v864
  %v897 = vadd.f32 %v832, %v865
  %v898 = vadd.f32 %v833, %v866
  %v899 = vadd.f32 %v834, %v867
  %v900 = vadd.f32 %v835, %v868
  %v901 = vadd.f32 %v836, %v869
  %v902 = vadd.f32 %v837, %v870
  %v903 = vadd.f32 %v838, %v871
  %v904 = vadd.f32 %v839, %v872
  %v905 = vadd.f32 %v840, %v873
  %v906 = vadd.f32 %v841, %v874
  %v907 = vadd.f32 %v842, %v875
  %v908 = vadd.f32 %v843, %v876
  %v909 = vadd.f32 %v844, %v877
  %v910 = vadd.f32 %v845, %v878
  %v911 = vadd.f32 %v846, %v879
  %v912 = vadd.f32 %v847, %v880
  %v913 = vadd.f32 %v848, %v881
  %v914 = vadd.f32 %v849, %v882
  %v915 = vperm.slane %v434, 5
  %v916 = vmul.f32 %v449, %v915
  %v917 = vmul.f32 %v450, %v915
  %v918 = vmul.f32 %v572, %v916
  %v919 = vmul.f32 %v571, %v917
  %v920 = vmul.f32 %v570, %v916
  %v921 = vmul.f32 %v569, %v917
  %v922 = vmul.f32 %v568, %v916
  %v923 = vmul.f32 %v567, %v917
  %v924 = vmul.f32 %v566, %v916
  %v925 = vmul.f32 %v565, %v917
  %v926 = vmul.f32 %v564, %v916
  %v927 = vmul.f32 %v563, %v917
  %v928 = vmul.f32 %v562, %v916
  %v929 = vmul.f32 %v561, %v917
  %v930 = vmul.f32 %v560, %v916
  %v931 = vmul.f32 %v559, %v917
  %v932 = vmul.f32 %v558, %v916
  %v933 = vmul.f32 %v557, %v917
  %v934 = vmul.f32 %v556, %v916
  %v935 = vmul.f32 %v555, %v917
  %v936 = vmul.f32 %v554, %v916
  %v937 = vmul.f32 %v553, %v917
  %v938 = vmul.f32 %v552, %v916
  %v939 = vmul.f32 %v551, %v917
  %v940 = vmul.f32 %v550, %v916
  %v941 = vmul.f32 %v549, %v917
  %v942 = vmul.f32 %v548, %v916
  %v943 = vmul.f32 %v547, %v917
  %v944 = vmul.f32 %v546, %v916
  %v945 = vmul.f32 %v545, %v917
  %v946 = vmul.f32 %v544, %v916
  %v947 = vmul.f32 %v781, %v917
  %v948 = vmul.f32 %v780, %v916
  %v949 = vmul.f32 %v782, %v917
  %v950 = vadd.f32 %v883, %v918
  %v951 = vadd.f32 %v884, %v919
  %v952 = vadd.f32 %v885, %v920
  %v953 = vadd.f32 %v886, %v921
  %v954 = vadd.f32 %v887, %v922
  %v955 = vadd.f32 %v888, %v923
  %v956 = vadd.f32 %v889, %v924
  %v957 = vadd.f32 %v890, %v925
  %v958 = vadd.f32 %v891, %v926
  %v959 = vadd.f32 %v892, %v927
  %v960 = vadd.f32 %v893, %v928
  %v961 = vadd.f32 %v894, %v929
  %v962 = vadd.f32 %v895, %v930
  %v963 = vadd.f32 %v896, %v931
  %v964 = vadd.f32 %v897, %v932
  %v965 = vadd.f32 %v898, %v933
  %v966 = vadd.f32 %v899, %v934
  %v967 = vadd.f32 %v900, %v935
  %v968 = vadd.f32 %v901, %v936
  %v969 = vadd.f32 %v902, %v937
  %v970 = vadd.f32 %v903, %v938
  %v971 = vadd.f32 %v904, %v939
  %v972 = vadd.f32 %v905, %v940
  %v973 = vadd.f32 %v906, %v941
  %v974 = vadd.f32 %v907, %v942
  %v975 = vadd.f32 %v908, %v943
  %v976 = vadd.f32 %v909, %v944
  %v977 = vadd.f32 %v910, %v945
  %v978 = vadd.f32 %v911, %v946
  %v979 = vadd.f32 %v912, %v947
  %v980 = vadd.f32 %v913, %v948
  %v981 = vadd.f32 %v914, %v949
  %v982 = vsel %vm481, %v774, 0.0
  %v983 = vsel %vm481, 0.0, %v453
  %v984 = vsel %vm543, %v779, 0.0
  %v985 = vsel %vm543, 0.0, %v515
  %v986 = vperm.slane %v434, 6
  %v987 = vmul.f32 %v443, %v986
  %v988 = vmul.f32 %v444, %v986
  %v989 = vmul.f32 %v983, %v987
  %v990 = vmul.f32 %v508, %v988
  %v991 = vmul.f32 %v507, %v987
  %v992 = vmul.f32 %v506, %v988
  %v993 = vmul.f32 %v505, %v987
  %v994 = vmul.f32 %v504, %v988
  %v995 = vmul.f32 %v503, %v987
  %v996 = vmul.f32 %v502, %v988
  %v997 = vmul.f32 %v501, %v987
  %v998 = vmul.f32 %v500, %v988
  %v999 = vmul.f32 %v499, %v987
  %v1000 = vmul.f32 %v498, %v988
  %v1001 = vmul.f32 %v497, %v987
  %v1002 = vmul.f32 %v496, %v988
  %v1003 = vmul.f32 %v495, %v987
  %v1004 = vmul.f32 %v494, %v988
  %v1005 = vmul.f32 %v493, %v987
  %v1006 = vmul.f32 %v492, %v988
  %v1007 = vmul.f32 %v491, %v987
  %v1008 = vmul.f32 %v490, %v988
  %v1009 = vmul.f32 %v489, %v987
  %v1010 = vmul.f32 %v488, %v988
  %v1011 = vmul.f32 %v487, %v987
  %v1012 = vmul.f32 %v486, %v988
  %v1013 = vmul.f32 %v485, %v987
  %v1014 = vmul.f32 %v484, %v988
  %v1015 = vmul.f32 %v483, %v987
  %v1016 = vmul.f32 %v482, %v988
  %v1017 = vmul.f32 %v776, %v987
  %v1018 = vmul.f32 %v775, %v988
  %v1019 = vmul.f32 %v982, %v987
  %v1020 = vmul.f32 0.0, %v988
  %v1021 = vadd.f32 %v950, %v989
  %v1022 = vadd.f32 %v951, %v990
  %v1023 = vadd.f32 %v952, %v991
  %v1024 = vadd.f32 %v953, %v992
  %v1025 = vadd.f32 %v954, %v993
  %v1026 = vadd.f32 %v955, %v994
  %v1027 = vadd.f32 %v956, %v995
  %v1028 = vadd.f32 %v957, %v996
  %v1029 = vadd.f32 %v958, %v997
  %v1030 = vadd.f32 %v959, %v998
  %v1031 = vadd.f32 %v960, %v999
  %v1032 = vadd.f32 %v961, %v1000
  %v1033 = vadd.f32 %v962, %v1001
  %v1034 = vadd.f32 %v963, %v1002
  %v1035 = vadd.f32 %v964, %v1003
  %v1036 = vadd.f32 %v965, %v1004
  %v1037 = vadd.f32 %v966, %v1005
  %v1038 = vadd.f32 %v967, %v1006
  %v1039 = vadd.f32 %v968, %v1007
  %v1040 = vadd.f32 %v969, %v1008
  %v1041 = vadd.f32 %v970, %v1009
  %v1042 = vadd.f32 %v971, %v1010
  %v1043 = vadd.f32 %v972, %v1011
  %v1044 = vadd.f32 %v973, %v1012
  %v1045 = vadd.f32 %v974, %v1013
  %v1046 = vadd.f32 %v975, %v1014
  %v1047 = vadd.f32 %v976, %v1015
  %v1048 = vadd.f32 %v977, %v1016
  %v1049 = vadd.f32 %v978, %v1017
  %v1050 = vadd.f32 %v979, %v1018
  %v1051 = vadd.f32 %v980, %v1019
  %v1052 = vadd.f32 %v981, %v1020
  %v1053 = vperm.slane %v434, 7
  %v1054 = vmul.f32 %v404, %v1053
  %v1055 = vmul.f32 %v405, %v1053
  %v1056 = vmul.f32 %v406, %v1053
  %v1057 = vmul.f32 %v407, %v1053
  %v1058 = vmul.f32 %v408, %v1053
  %v1059 = vmul.f32 %v409, %v1053
  %v1060 = vmul.f32 %v410, %v1053
  %v1061 = vmul.f32 %v411, %v1053
  %v1062 = vmul.f32 %v412, %v1053
  %v1063 = vmul.f32 %v413, %v1053
  %v1064 = vmul.f32 %v414, %v1053
  %v1065 = vmul.f32 %v415, %v1053
  %v1066 = vmul.f32 %v416, %v1053
  %v1067 = vmul.f32 %v417, %v1053
  %v1068 = vmul.f32 %v418, %v1053
  %v1069 = vmul.f32 %v419, %v1053
  %v1070 = vmul.f32 %v420, %v1053
  %v1071 = vmul.f32 %v421, %v1053
  %v1072 = vmul.f32 %v422, %v1053
  %v1073 = vmul.f32 %v423, %v1053
  %v1074 = vmul.f32 %v424, %v1053
  %v1075 = vmul.f32 %v425, %v1053
  %v1076 = vmul.f32 %v426, %v1053
  %v1077 = vmul.f32 %v427, %v1053
  %v1078 = vmul.f32 %v428, %v1053
  %v1079 = vmul.f32 %v429, %v1053
  %v1080 = vmul.f32 %v430, %v1053
  %v1081 = vmul.f32 %v431, %v1053
  %v1082 = vmul.f32 %v432, %v1053
  %v1083 = vmul.f32 %v433, %v1053
  %v1084 = vmul.f32 %v1053, 0.0
  %v1085 = vadd.f32 %v1021, %v1054
  %v1086 = vadd.f32 %v1022, %v1055
  %v1087 = vadd.f32 %v1023, %v1056
  %v1088 = vadd.f32 %v1024, %v1057
  %v1089 = vadd.f32 %v1025, %v1058
  %v1090 = vadd.f32 %v1026, %v1059
  %v1091 = vadd.f32 %v1027, %v1060
  %v1092 = vadd.f32 %v1028, %v1061
  %v1093 = vadd.f32 %v1029, %v1062
  %v1094 = vadd.f32 %v1030, %v1063
  %v1095 = vadd.f32 %v1031, %v1064
  %v1096 = vadd.f32 %v1032, %v1065
  %v1097 = vadd.f32 %v1033, %v1066
  %v1098 = vadd.f32 %v1034, %v1067
  %v1099 = vadd.f32 %v1035, %v1068
  %v1100 = vadd.f32 %v1036, %v1069
  %v1101 = vadd.f32 %v1037, %v1070
  %v1102 = vadd.f32 %v1038, %v1071
  %v1103 = vadd.f32 %v1039, %v1072
  %v1104 = vadd.f32 %v1040, %v1073
  %v1105 = vadd.f32 %v1041, %v1074
  %v1106 = vadd.f32 %v1042, %v1075
  %v1107 = vadd.f32 %v1043, %v1076
  %v1108 = vadd.f32 %v1044, %v1077
  %v1109 = vadd.f32 %v1045, %v1078
  %v1110 = vadd.f32 %v1046, %v1079
  %v1111 = vadd.f32 %v1047, %v1080
  %v1112 = vadd.f32 %v1048, %v1081
  %v1113 = vadd.f32 %v1049, %v1082
  %v1114 = vadd.f32 %v1050, %v1083
  %v1115 = vadd.f32 %v1051, %v1084
  %v1116 = vadd.f32 %v1052, %v1084
  %v1117 = vperm.slane %v435, 0
  %v1118 = vmul.f32 %v449, %v1117
  %v1119 = vmul.f32 %v450, %v1117
  %v1120 = vmul.f32 %v570, %v1118
  %v1121 = vmul.f32 %v569, %v1119
  %v1122 = vmul.f32 %v568, %v1118
  %v1123 = vmul.f32 %v567, %v1119
  %v1124 = vmul.f32 %v566, %v1118
  %v1125 = vmul.f32 %v565, %v1119
  %v1126 = vmul.f32 %v564, %v1118
  %v1127 = vmul.f32 %v563, %v1119
  %v1128 = vmul.f32 %v562, %v1118
  %v1129 = vmul.f32 %v561, %v1119
  %v1130 = vmul.f32 %v560, %v1118
  %v1131 = vmul.f32 %v559, %v1119
  %v1132 = vmul.f32 %v558, %v1118
  %v1133 = vmul.f32 %v557, %v1119
  %v1134 = vmul.f32 %v556, %v1118
  %v1135 = vmul.f32 %v555, %v1119
  %v1136 = vmul.f32 %v554, %v1118
  %v1137 = vmul.f32 %v553, %v1119
  %v1138 = vmul.f32 %v552, %v1118
  %v1139 = vmul.f32 %v551, %v1119
  %v1140 = vmul.f32 %v550, %v1118
  %v1141 = vmul.f32 %v549, %v1119
  %v1142 = vmul.f32 %v548, %v1118
  %v1143 = vmul.f32 %v547, %v1119
  %v1144 = vmul.f32 %v546, %v1118
  %v1145 = vmul.f32 %v545, %v1119
  %v1146 = vmul.f32 %v544, %v1118
  %v1147 = vmul.f32 %v781, %v1119
  %v1148 = vmul.f32 %v780, %v1118
  %v1149 = vmul.f32 %v984, %v1119
  %v1150 = vmul.f32 0.0, %v1118
  %v1151 = vmul.f32 %v985, %v1119
  %v1152 = vadd.f32 %v1085, %v1120
  %v1153 = vadd.f32 %v1086, %v1121
  %v1154 = vadd.f32 %v1087, %v1122
  %v1155 = vadd.f32 %v1088, %v1123
  %v1156 = vadd.f32 %v1089, %v1124
  %v1157 = vadd.f32 %v1090, %v1125
  %v1158 = vadd.f32 %v1091, %v1126
  %v1159 = vadd.f32 %v1092, %v1127
  %v1160 = vadd.f32 %v1093, %v1128
  %v1161 = vadd.f32 %v1094, %v1129
  %v1162 = vadd.f32 %v1095, %v1130
  %v1163 = vadd.f32 %v1096, %v1131
  %v1164 = vadd.f32 %v1097, %v1132
  %v1165 = vadd.f32 %v1098, %v1133
  %v1166 = vadd.f32 %v1099, %v1134
  %v1167 = vadd.f32 %v1100, %v1135
  %v1168 = vadd.f32 %v1101, %v1136
  %v1169 = vadd.f32 %v1102, %v1137
  %v1170 = vadd.f32 %v1103, %v1138
  %v1171 = vadd.f32 %v1104, %v1139
  %v1172 = vadd.f32 %v1105, %v1140
  %v1173 = vadd.f32 %v1106, %v1141
  %v1174 = vadd.f32 %v1107, %v1142
  %v1175 = vadd.f32 %v1108, %v1143
  %v1176 = vadd.f32 %v1109, %v1144
  %v1177 = vadd.f32 %v1110, %v1145
  %v1178 = vadd.f32 %v1111, %v1146
  %v1179 = vadd.f32 %v1112, %v1147
  %v1180 = vadd.f32 %v1113, %v1148
  %v1181 = vadd.f32 %v1114, %v1149
  %v1182 = vadd.f32 %v1115, %v1150
  %v1183 = vadd.f32 %v1116, %v1151
  %v1184 = vperm.slane %v58, 1
  %v1185 = vadd.f32 %v1152, %v1184
  %v1186 = vadd.f32 %v1153, %v1184
  %v1187 = vadd.f32 %v1154, %v1184
  %v1188 = vadd.f32 %v1155, %v1184
  %v1189 = vadd.f32 %v1156, %v1184
  %v1190 = vadd.f32 %v1157, %v1184
  %v1191 = vadd.f32 %v1158, %v1184
  %v1192 = vadd.f32 %v1159, %v1184
  %v1193 = vadd.f32 %v1160, %v1184
  %v1194 = vadd.f32 %v1161, %v1184
  %v1195 = vadd.f32 %v1162, %v1184
  %v1196 = vadd.f32 %v1163, %v1184
  %v1197 = vadd.f32 %v1164, %v1184
  %v1198 = vadd.f32 %v1165, %v1184
  %v1199 = vadd.f32 %v1166, %v1184
  %v1200 = vadd.f32 %v1167, %v1184
  %v1201 = vadd.f32 %v1168, %v1184
  %v1202 = vadd.f32 %v1169, %v1184
  %v1203 = vadd.f32 %v1170, %v1184
  %v1204 = vadd.f32 %v1171, %v1184
  %v1205 = vadd.f32 %v1172, %v1184
  %v1206 = vadd.f32 %v1173, %v1184
  %v1207 = vadd.f32 %v1174, %v1184
  %v1208 = vadd.f32 %v1175, %v1184
  %v1209 = vadd.f32 %v1176, %v1184
  %v1210 = vadd.f32 %v1177, %v1184
  %v1211 = vadd.f32 %v1178, %v1184
  %v1212 = vadd.f32 %v1179, %v1184
  %v1213 = vadd.f32 %v1180, %v1184
  %v1214 = vadd.f32 %v1181, %v1184
  %v1215 = vadd.f32 %v1182, %v1184
  %v1216 = vadd.f32 %v1183, %v1184
  %v1217 = vadd.f32 %v1185, 3.0
  %v1218 = vadd.f32 %v1186, 3.0
  %v1219 = vadd.f32 %v1187, 3.0
  %v1220 = vadd.f32 %v1188, 3.0
  %v1221 = vadd.f32 %v1189, 3.0
  %v1222 = vadd.f32 %v1190, 3.0
  %v1223 = vadd.f32 %v1191, 3.0
  %v1224 = vadd.f32 %v1192, 3.0
  %v1225 = vadd.f32 %v1193, 3.0
  %v1226 = vadd.f32 %v1194, 3.0
  %v1227 = vadd.f32 %v1195, 3.0
  %v1228 = vadd.f32 %v1196, 3.0
  %v1229 = vadd.f32 %v1197, 3.0
  %v1230 = vadd.f32 %v1198, 3.0
  %v1231 = vadd.f32 %v1199, 3.0
  %v1232 = vadd.f32 %v1200, 3.0
  %v1233 = vadd.f32 %v1201, 3.0
  %v1234 = vadd.f32 %v1202, 3.0
  %v1235 = vadd.f32 %v1203, 3.0
  %v1236 = vadd.f32 %v1204, 3.0
  %v1237 = vadd.f32 %v1205, 3.0
  %v1238 = vadd.f32 %v1206, 3.0
  %v1239 = vadd.f32 %v1207, 3.0
  %v1240 = vadd.f32 %v1208, 3.0
  %v1241 = vadd.f32 %v1209, 3.0
  %v1242 = vadd.f32 %v1210, 3.0
  %v1243 = vadd.f32 %v1211, 3.0
  %v1244 = vadd.f32 %v1212, 3.0
  %v1245 = vadd.f32 %v1213, 3.0
  %v1246 = vadd.f32 %v1214, 3.0
  %v1247 = vadd.f32 %v1215, 3.0
  %v1248 = vadd.f32 %v1216, 3.0
  %v1249 = vmax.f32 %v1217, 0.0
  %v1250 = vmax.f32 %v1218, 0.0
  %v1251 = vmax.f32 %v1219, 0.0
  %v1252 = vmax.f32 %v1220, 0.0
  %v1253 = vmax.f32 %v1221, 0.0
  %v1254 = vmax.f32 %v1222, 0.0
  %v1255 = vmax.f32 %v1223, 0.0
  %v1256 = vmax.f32 %v1224, 0.0
  %v1257 = vmax.f32 %v1225, 0.0
  %v1258 = vmax.f32 %v1226, 0.0
  %v1259 = vmax.f32 %v1227, 0.0
  %v1260 = vmax.f32 %v1228, 0.0
  %v1261 = vmax.f32 %v1229, 0.0
  %v1262 = vmax.f32 %v1230, 0.0
  %v1263 = vmax.f32 %v1231, 0.0
  %v1264 = vmax.f32 %v1232, 0.0
  %v1265 = vmax.f32 %v1233, 0.0
  %v1266 = vmax.f32 %v1234, 0.0
  %v1267 = vmax.f32 %v1235, 0.0
  %v1268 = vmax.f32 %v1236, 0.0
  %v1269 = vmax.f32 %v1237, 0.0
  %v1270 = vmax.f32 %v1238, 0.0
  %v1271 = vmax.f32 %v1239, 0.0
  %v1272 = vmax.f32 %v1240, 0.0
  %v1273 = vmax.f32 %v1241, 0.0
  %v1274 = vmax.f32 %v1242, 0.0
  %v1275 = vmax.f32 %v1243, 0.0
  %v1276 = vmax.f32 %v1244, 0.0
  %v1277 = vmax.f32 %v1245, 0.0
  %v1278 = vmax.f32 %v1246, 0.0
  %v1279 = vmax.f32 %v1247, 0.0
  %v1280 = vmax.f32 %v1248, 0.0
  %v1281 = vmin.f32 %v1249, 6.0
  %v1282 = vmin.f32 %v1250, 6.0
  %v1283 = vmin.f32 %v1251, 6.0
  %v1284 = vmin.f32 %v1252, 6.0
  %v1285 = vmin.f32 %v1253, 6.0
  %v1286 = vmin.f32 %v1254, 6.0
  %v1287 = vmin.f32 %v1255, 6.0
  %v1288 = vmin.f32 %v1256, 6.0
  %v1289 = vmin.f32 %v1257, 6.0
  %v1290 = vmin.f32 %v1258, 6.0
  %v1291 = vmin.f32 %v1259, 6.0
  %v1292 = vmin.f32 %v1260, 6.0
  %v1293 = vmin.f32 %v1261, 6.0
  %v1294 = vmin.f32 %v1262, 6.0
  %v1295 = vmin.f32 %v1263, 6.0
  %v1296 = vmin.f32 %v1264, 6.0
  %v1297 = vmin.f32 %v1265, 6.0
  %v1298 = vmin.f32 %v1266, 6.0
  %v1299 = vmin.f32 %v1267, 6.0
  %v1300 = vmin.f32 %v1268, 6.0
  %v1301 = vmin.f32 %v1269, 6.0
  %v1302 = vmin.f32 %v1270, 6.0
  %v1303 = vmin.f32 %v1271, 6.0
  %v1304 = vmin.f32 %v1272, 6.0
  %v1305 = vmin.f32 %v1273, 6.0
  %v1306 = vmin.f32 %v1274, 6.0
  %v1307 = vmin.f32 %v1275, 6.0
  %v1308 = vmin.f32 %v1276, 6.0
  %v1309 = vmin.f32 %v1277, 6.0
  %v1310 = vmin.f32 %v1278, 6.0
  %v1311 = vmin.f32 %v1279, 6.0
  %v1312 = vmin.f32 %v1280, 6.0
  %v1313 = vmul.f32 %v1185, %v1281
  %v1314 = vmul.f32 %v1186, %v1282
  %v1315 = vmul.f32 %v1187, %v1283
  %v1316 = vmul.f32 %v1188, %v1284
  %v1317 = vmul.f32 %v1189, %v1285
  %v1318 = vmul.f32 %v1190, %v1286
  %v1319 = vmul.f32 %v1191, %v1287
  %v1320 = vmul.f32 %v1192, %v1288
  %v1321 = vmul.f32 %v1193, %v1289
  %v1322 = vmul.f32 %v1194, %v1290
  %v1323 = vmul.f32 %v1195, %v1291
  %v1324 = vmul.f32 %v1196, %v1292
  %v1325 = vmul.f32 %v1197, %v1293
  %v1326 = vmul.f32 %v1198, %v1294
  %v1327 = vmul.f32 %v1199, %v1295
  %v1328 = vmul.f32 %v1200, %v1296
  %v1329 = vmul.f32 %v1201, %v1297
  %v1330 = vmul.f32 %v1202, %v1298
  %v1331 = vmul.f32 %v1203, %v1299
  %v1332 = vmul.f32 %v1204, %v1300
  %v1333 = vmul.f32 %v1205, %v1301
  %v1334 = vmul.f32 %v1206, %v1302
  %v1335 = vmul.f32 %v1207, %v1303
  %v1336 = vmul.f32 %v1208, %v1304
  %v1337 = vmul.f32 %v1209, %v1305
  %v1338 = vmul.f32 %v1210, %v1306
  %v1339 = vmul.f32 %v1211, %v1307
  %v1340 = vmul.f32 %v1212, %v1308
  %v1341 = vmul.f32 %v1213, %v1309
  %v1342 = vmul.f32 %v1214, %v1310
  %v1343 = vmul.f32 %v1215, %v1311
  %v1344 = vmul.f32 %v1216, %v1312
  %v1345 = vmul.f32 %v1313, 0.16666667
  %v1346 = vmul.f32 %v1314, 0.16666667
  %v1347 = vmul.f32 %v1315, 0.16666667
  %v1348 = vmul.f32 %v1316, 0.16666667
  %v1349 = vmul.f32 %v1317, 0.16666667
  %v1350 = vmul.f32 %v1318, 0.16666667
  %v1351 = vmul.f32 %v1319, 0.16666667
  %v1352 = vmul.f32 %v1320, 0.16666667
  %v1353 = vmul.f32 %v1321, 0.16666667
  %v1354 = vmul.f32 %v1322, 0.16666667
  %v1355 = vmul.f32 %v1323, 0.16666667
  %v1356 = vmul.f32 %v1324, 0.16666667
  %v1357 = vmul.f32 %v1325, 0.16666667
  %v1358 = vmul.f32 %v1326, 0.16666667
  %v1359 = vmul.f32 %v1327, 0.16666667
  %v1360 = vmul.f32 %v1328, 0.16666667
  %v1361 = vmul.f32 %v1329, 0.16666667
  %v1362 = vmul.f32 %v1330, 0.16666667
  %v1363 = vmul.f32 %v1331, 0.16666667
  %v1364 = vmul.f32 %v1332, 0.16666667
  %v1365 = vmul.f32 %v1333, 0.16666667
  %v1366 = vmul.f32 %v1334, 0.16666667
  %v1367 = vmul.f32 %v1335, 0.16666667
  %v1368 = vmul.f32 %v1336, 0.16666667
  %v1369 = vmul.f32 %v1337, 0.16666667
  %v1370 = vmul.f32 %v1338, 0.16666667
  %v1371 = vmul.f32 %v1339, 0.16666667
  %v1372 = vmul.f32 %v1340, 0.16666667
  %v1373 = vmul.f32 %v1341, 0.16666667
  %v1374 = vmul.f32 %v1342, 0.16666667
  %v1375 = vmul.f32 %v1343, 0.16666667
  %v1376 = vmul.f32 %v1344, 0.16666667
  %v1377 = vadd.f32 %v1345, %v1346
  %v1378 = vadd.f32 %v1377, %v1347
  %v1379 = vadd.f32 %v1378, %v1348
  %v1380 = vadd.f32 %v1379, %v1349
  %v1381 = vadd.f32 %v1380, %v1350
  %v1382 = vadd.f32 %v1381, %v1351
  %v1383 = vadd.f32 %v1382, %v1352
  %v1384 = vadd.f32 %v1383, %v1353
  %v1385 = vadd.f32 %v1384, %v1354
  %v1386 = vadd.f32 %v1385, %v1355
  %v1387 = vadd.f32 %v1386, %v1356
  %v1388 = vadd.f32 %v1387, %v1357
  %v1389 = vadd.f32 %v1388, %v1358
  %v1390 = vadd.f32 %v1389, %v1359
  %v1391 = vadd.f32 %v1390, %v1360
  %v1392 = vadd.f32 %v1391, %v1361
  %v1393 = vadd.f32 %v1392, %v1362
  %v1394 = vadd.f32 %v1393, %v1363
  %v1395 = vadd.f32 %v1394, %v1364
  %v1396 = vadd.f32 %v1395, %v1365
  %v1397 = vadd.f32 %v1396, %v1366
  %v1398 = vadd.f32 %v1397, %v1367
  %v1399 = vadd.f32 %v1398, %v1368
  %v1400 = vadd.f32 %v1399, %v1369
  %v1401 = vadd.f32 %v1400, %v1370
  %v1402 = vadd.f32 %v1401, %v1371
  %v1403 = vadd.f32 %v1402, %v1372
  %v1404 = vadd.f32 %v1403, %v1373
  %v1405 = vadd.f32 %v1404, %v1374
  %v1406 = vadd.f32 %v1405, %v1375
  %v1407 = vadd.f32 %v1406, %v1376
  %v1408 = vrot.slane %v1407, 4
  %v1409 = vadd.f32 %v1407, %v1408
  %v1410 = vrot.slane %v1409, 2
  %v1411 = vadd.f32 %v1409, %v1410
  %v1412 = vrot.slane %v1411, 1
  %v1413 = vadd.f32 %v1411, %v1412
  %v1414 = vmul.f32 %v1413, 0.00390625
  %v1415 = vld [vmem:[%s3] sm:$0xff]
  %v1416 = vld [vmem:[%s3 + $0x8] sm:$0xff]
  %v1417 = vld [vmem:[%s3 + $0x10] sm:$0xff]
  %v1418 = vld [vmem:[%s3 + $0x18] sm:$0xff]
  %v1419 = vld [vmem:[%s3 + $0x20] sm:$0xff]
  %v1420 = vld [vmem:[%s3 + $0x28] sm:$0xff]
  %v1421 = vld [vmem:[%s3 + $0x30] sm:$0xff]
  %v1422 = vld [vmem:[%s3 + $0x38] sm:$0xff]
  %v1423 = vld [vmem:[%s3 + $0x40] sm:$0xff]
  %v1424 = vld [vmem:[%s3 + $0x48] sm:$0xff]
  %v1425 = vld [vmem:[%s3 + $0x50] sm:$0xff]
  %v1426 = vld [vmem:[%s3 + $0x58] sm:$0xff]
  %v1427 = vld [vmem:[%s3 + $0x60] sm:$0xff]
  %v1428 = vld [vmem:[%s3 + $0x68] sm:$0xff]
  %v1429 = vld [vmem:[%s3 + $0x70] sm:$0xff]
  %v1430 = vld [vmem:[%s3 + $0x78] sm:$0xff]
  %v1432 = vrot.slane %v58, 2
  %1434 = vmatpush.msra.mxu0 %v1430
  %1435 = vmatpush.msra.mxu0 %v1429
  %1436 = vmatpush.msra.mxu0 %v1428
  %1437 = vmatpush.msra.mxu0 %v1427
  %1438 = vmatpush.msra.mxu0 %v1426
  %1439 = vmatpush.msra.mxu0 %v1425
  %1440 = vmatpush.msra.mxu0 %v1424
  %1441 = vmatpush.msra.mxu0 %v1423
  %1442 = vmatpush.msra.mxu0 %v1422
  %1443 = vmatpush.msra.mxu0 %v1421
  %1444 = vmatpush.msra.mxu0 %v1420
  %1445 = vmatpush.msra.mxu0 %v1419
  %1446 = vmatpush.msra.mxu0 %v1418
  %1447 = vmatpush.msra.mxu0 %v1417
  %1448 = vmatpush.msra.mxu0 %v1416
  %1449 = vmatpush.msra.mxu0 %v1415
  %1450 = vmatmul.f32.gmra.mxu0 %v1414
  %v1451 = vpop.f32.mrf.mxu0
  %v1452 = vadd.f32 %v1432, %v1451
  %1453 = vdwg.mxu0
  %v1454 = vmax.f32 %v1452, 0.0
  %v1455 = vld [vmem:[%s4] sm:$0xff]
  %v1456 = vld [vmem:[%s4 + $0x8] sm:$0xff]
  %v1457 = vld [vmem:[%s4 + $0x10] sm:$0xff]
  %v1458 = vld [vmem:[%s4 + $0x18] sm:$0xff]
  %v1459 = vrot.slane %v58, 3
  %v1462 = vsel %vm64, %v1454, 0
  %1464 = vmatpush.msra.mxu0 0.0
  %1465 = vmatpush.msra.mxu0 0.0
  %1466 = vmatpush.msra.mxu0 0.0
  %1467 = vmatpush.msra.mxu0 0.0
  %1468 = vmatpush.msra.mxu0 0.0
  %1469 = vmatpush.msra.mxu0 0.0
  %1470 = vmatpush.msra.mxu0 0.0
  %1471 = vmatpush.msra.mxu0 0.0
  %1472 = vmatpush.msra.mxu0 0.0
  %1473 = vmatpush.msra.mxu0 0.0
  %1474 = vmatpush.msra.mxu0 0.0
  %1475 = vmatpush.msra.mxu0 0.0
  %1476 = vmatpush.msra.mxu0 %v1458
  %1477 = vmatpush.msra.mxu0 %v1457
  %1478 = vmatpush.msra.mxu0 %v1456
  %1479 = vmatpush.msra.mxu0 %v1455
  %1480 = vmatmul.f32.gmra.mxu0 %v1462
  %v1481 = vpop.f32.mrf.mxu0
  %v1482 = vadd.f32 %v1459, %v1481
  %1483 = vdwg.mxu0
  %v1484 = vadd.f32 %v1482, 3.0
  %v1485 = vmax.f32 %v1484, 0.0
  %v1486 = vmin.f32 %v1485, 6.0
  %v1487 = vmul.f32 %v1486, 0.16666667
  %v1488 = vperm.slane %v1487, 0
  %v1489 = vmul.f32 %v1345, %v1488
  %v1490 = vmul.f32 %v1346, %v1488
  %v1491 = vmul.f32 %v1347, %v1488
  %v1492 = vmul.f32 %v1348, %v1488
  %v1493 = vmul.f32 %v1349, %v1488
  %v1494 = vmul.f32 %v1350, %v1488
  %v1495 = vmul.f32 %v1351, %v1488
  %v1496 = vmul.f32 %v1352, %v1488
  %v1497 = vmul.f32 %v1353, %v1488
  %v1498 = vmul.f32 %v1354, %v1488
  %v1499 = vmul.f32 %v1355, %v1488
  %v1500 = vmul.f32 %v1356, %v1488
  %v1501 = vmul.f32 %v1357, %v1488
  %v1502 = vmul.f32 %v1358, %v1488
  %v1503 = vmul.f32 %v1359, %v1488
  %v1504 = vmul.f32 %v1360, %v1488
  %v1505 = vmul.f32 %v1361, %v1488
  %v1506 = vmul.f32 %v1362, %v1488
  %v1507 = vmul.f32 %v1363, %v1488
  %v1508 = vmul.f32 %v1364, %v1488
  %v1509 = vmul.f32 %v1365, %v1488
  %v1510 = vmul.f32 %v1366, %v1488
  %v1511 = vmul.f32 %v1367, %v1488
  %v1512 = vmul.f32 %v1368, %v1488
  %v1513 = vmul.f32 %v1369, %v1488
  %v1514 = vmul.f32 %v1370, %v1488
  %v1515 = vmul.f32 %v1371, %v1488
  %v1516 = vmul.f32 %v1372, %v1488
  %v1517 = vmul.f32 %v1373, %v1488
  %v1518 = vmul.f32 %v1374, %v1488
  %v1519 = vmul.f32 %v1375, %v1488
  %v1520 = vmul.f32 %v1376, %v1488
  %v1521 = vld [vmem:[%s5] sm:$0xff]
  %v1522 = vld [vmem:[%s5 + $0x8] sm:$0xff]
  %v1523 = vld [vmem:[%s5 + $0x10] sm:$0xff]
  %v1524 = vld [vmem:[%s5 + $0x18] sm:$0xff]
  %v1525 = vld [vmem:[%s5 + $0x20] sm:$0xff]
  %v1526 = vld [vmem:[%s5 + $0x28] sm:$0xff]
  %v1527 = vld [vmem:[%s5 + $0x30] sm:$0xff]
  %v1528 = vld [vmem:[%s5 + $0x38] sm:$0xff]
  %v1529 = vld [vmem:[%s5 + $0x40] sm:$0xff]
  %v1530 = vld [vmem:[%s5 + $0x48] sm:$0xff]
  %v1531 = vld [vmem:[%s5 + $0x50] sm:$0xff]
  %v1532 = vld [vmem:[%s5 + $0x58] sm:$0xff]
  %v1533 = vld [vmem:[%s5 + $0x60] sm:$0xff]
  %v1534 = vld [vmem:[%s5 + $0x68] sm:$0xff]
  %v1535 = vld [vmem:[%s5 + $0x70] sm:$0xff]
  %v1536 = vld [vmem:[%s5 + $0x78] sm:$0xff]
  %v1537 = vperm.slane %v58, 4
  %1538 = vmatpush.msra.mxu0 %v1536
  %1539 = vmatpush.msra.mxu0 %v1535
  %1540 = vmatpush.msra.mxu0 %v1534
  %1541 = vmatpush.msra.mxu0 %v1533
  %1542 = vmatpush.msra.mxu0 %v1532
  %1543 = vmatpush.msra.mxu0 %v1531
  %1544 = vmatpush.msra.mxu0 %v1530
  %1545 = vmatpush.msra.mxu0 %v1529
  %1546 = vmatpush.msra.mxu0 %v1528
  %1547 = vmatpush.msra.mxu0 %v1527
  %1548 = vmatpush.msra.mxu0 %v1526
  %1549 = vmatpush.msra.mxu0 %v1525
  %1550 = vmatpush.msra.mxu0 %v1524
  %1551 = vmatpush.msra.mxu0 %v1523
  %1552 = vmatpush.msra.mxu0 %v1522
  %1553 = vmatpush.msra.mxu0 %v1521
  %1554 = vmatmul.f32.gmra.mxu0 %v1489
  %v1555 = vpop.f32.mrf.mxu0
  %v1556 = vadd.f32 %v1537, %v1555
  %1557 = vmatmul.f32.gmra.mxu0 %v1490
  %v1558 = vpop.f32.mrf.mxu0
  %v1559 = vadd.f32 %v1537, %v1558
  %1560 = vmatmul.f32.gmra.mxu0 %v1491
  %v1561 = vpop.f32.mrf.mxu0
  %v1562 = vadd.f32 %v1537, %v1561
  %1563 = vmatmul.f32.gmra.mxu0 %v1492
  %v1564 = vpop.f32.mrf.mxu0
  %v1565 = vadd.f32 %v1537, %v1564
  %1566 = vmatmul.f32.gmra.mxu0 %v1493
  %v1567 = vpop.f32.mrf.mxu0
  %v1568 = vadd.f32 %v1537, %v1567
  %1569 = vmatmul.f32.gmra.mxu0 %v1494
  %v1570 = vpop.f32.mrf.mxu0
  %v1571 = vadd.f32 %v1537, %v1570
  %1572 = vmatmul.f32.gmra.mxu0 %v1495
  %v1573 = vpop.f32.mrf.mxu0
  %v1574 = vadd.f32 %v1537, %v1573
  %1575 = vmatmul.f32.gmra.mxu0 %v1496
  %v1576 = vpop.f32.mrf.mxu0
  %v1577 = vadd.f32 %v1537, %v1576
  %1578 = vmatmul.f32.gmra.mxu0 %v1497
  %v1579 = vpop.f32.mrf.mxu0
  %v1580 = vadd.f32 %v1537, %v1579
  %1581 = vmatmul.f32.gmra.mxu0 %v1498
  %v1582 = vpop.f32.mrf.mxu0
  %v1583 = vadd.f32 %v1537, %v1582
  %1584 = vmatmul.f32.gmra.mxu0 %v1499
  %v1585 = vpop.f32.mrf.mxu0
  %v1586 = vadd.f32 %v1537, %v1585
  %1587 = vmatmul.f32.gmra.mxu0 %v1500
  %v1588 = vpop.f32.mrf.mxu0
  %v1589 = vadd.f32 %v1537, %v1588
  %1590 = vmatmul.f32.gmra.mxu0 %v1501
  %v1591 = vpop.f32.mrf.mxu0
  %v1592 = vadd.f32 %v1537, %v1591
  %1593 = vmatmul.f32.gmra.mxu0 %v1502
  %v1594 = vpop.f32.mrf.mxu0
  %v1595 = vadd.f32 %v1537, %v1594
  %1596 = vmatmul.f32.gmra.mxu0 %v1503
  %v1597 = vpop.f32.mrf.mxu0
  %v1598 = vadd.f32 %v1537, %v1597
  %1599 = vmatmul.f32.gmra.mxu0 %v1504
  %v1600 = vpop.f32.mrf.mxu0
  %v1601 = vadd.f32 %v1537, %v1600
  %1602 = vmatmul.f32.gmra.mxu0 %v1505
  %v1603 = vpop.f32.mrf.mxu0
  %v1604 = vadd.f32 %v1537, %v1603
  %1605 = vmatmul.f32.gmra.mxu0 %v1506
  %v1606 = vpop.f32.mrf.mxu0
  %v1607 = vadd.f32 %v1537, %v1606
  %1608 = vmatmul.f32.gmra.mxu0 %v1507
  %v1609 = vpop.f32.mrf.mxu0
  %v1610 = vadd.f32 %v1537, %v1609
  %1611 = vmatmul.f32.gmra.mxu0 %v1508
  %v1612 = vpop.f32.mrf.mxu0
  %v1613 = vadd.f32 %v1537, %v1612
  %1614 = vmatmul.f32.gmra.mxu0 %v1509
  %v1615 = vpop.f32.mrf.mxu0
  %v1616 = vadd.f32 %v1537, %v1615
  %1617 = vmatmul.f32.gmra.mxu0 %v1510
  %v1618 = vpop.f32.mrf.mxu0
  %v1619 = vadd.f32 %v1537, %v1618
  %1620 = vmatmul.f32.gmra.mxu0 %v1511
  %v1621 = vpop.f32.mrf.mxu0
  %v1622 = vadd.f32 %v1537, %v1621
  %1623 = vmatmul.f32.gmra.mxu0 %v1512
  %v1624 = vpop.f32.mrf.mxu0
  %v1625 = vadd.f32 %v1537, %v1624
  %1626 = vmatmul.f32.gmra.mxu0 %v1513
  %v1627 = vpop.f32.mrf.mxu0
  %v1628 = vadd.f32 %v1537, %v1627
  %1629 = vmatmul.f32.gmra.mxu0 %v1514
  %v1630 = vpop.f32.mrf.mxu0
  %v1631 = vadd.f32 %v1537, %v1630
  %1632 = vmatmul.f32.gmra.mxu0 %v1515
  %v1633 = vpop.f32.mrf.mxu0
  %v1634 = vadd.f32 %v1537, %v1633
  %1635 = vmatmul.f32.gmra.mxu0 %v1516
  %v1636 = vpop.f32.mrf.mxu0
  %v1637 = vadd.f32 %v1537, %v1636
  %1638 = vmatmul.f32.gmra.mxu0 %v1517
  %v1639 = vpop.f32.mrf.mxu0
  %v1640 = vadd.f32 %v1537, %v1639
  %1641 = vmatmul.f32.gmra.mxu0 %v1518
  %v1642 = vpop.f32.mrf.mxu0
  %v1643 = vadd.f32 %v1537, %v1642
  %1644 = vmatmul.f32.gmra.mxu0 %v1519
  %v1645 = vpop.f32.mrf.mxu0
  %v1646 = vadd.f32 %v1537, %v1645
  %1647 = vmatmul.f32.gmra.mxu0 %v1520
  %v1648 = vpop.f32.mrf.mxu0
  %v1649 = vadd.f32 %v1537, %v1648
  %1650 = vdwg.mxu0
  %v1651 = vadd.f32 %v1556, %v26
  %v1652 = vadd.f32 %v1559, %v27
  %v1653 = vadd.f32 %v1562, %v28
  %v1654 = vadd.f32 %v1565, %v29
  %v1655 = vadd.f32 %v1568, %v30
  %v1656 = vadd.f32 %v1571, %v31
  %v1657 = vadd.f32 %v1574, %v32
  %v1658 = vadd.f32 %v1577, %v33
  %v1659 = vadd.f32 %v1580, %v34
  %v1660 = vadd.f32 %v1583, %v35
  %v1661 = vadd.f32 %v1586, %v36
  %v1662 = vadd.f32 %v1589, %v37
  %v1663 = vadd.f32 %v1592, %v38
  %v1664 = vadd.f32 %v1595, %v39
  %v1665 = vadd.f32 %v1598, %v40
  %v1666 = vadd.f32 %v1601, %v41
  %v1667 = vadd.f32 %v1604, %v42
  %v1668 = vadd.f32 %v1607, %v43
  %v1669 = vadd.f32 %v1610, %v44
  %v1670 = vadd.f32 %v1613, %v45
  %v1671 = vadd.f32 %v1616, %v46
  %v1672 = vadd.f32 %v1619, %v47
  %v1673 = vadd.f32 %v1622, %v48
  %v1674 = vadd.f32 %v1625, %v49
  %v1675 = vadd.f32 %v1628, %v50
  %v1676 = vadd.f32 %v1631, %v51
  %v1677 = vadd.f32 %v1634, %v52
  %v1678 = vadd.f32 %v1637, %v53
  %v1679 = vadd.f32 %v1640, %v54
  %v1680 = vadd.f32 %v1643, %v55
  %v1681 = vadd.f32 %v1646, %v56
  %v1682 = vadd.f32 %v1649, %v57
  %1683 = vst.msk [vmem:[%s7] sm:$0xff] %vm64, %v1651
  %1684 = vst.msk [vmem:[%s7 + $0x8] sm:$0xff] %vm64, %v1652
  %1685 = vst.msk [vmem:[%s7 + $0x10] sm:$0xff] %vm64, %v1653
  %1686 = vst.msk [vmem:[%s7 + $0x18] sm:$0xff] %vm64, %v1654
  %1687 = vst.msk [vmem:[%s7 + $0x20] sm:$0xff] %vm64, %v1655
  %1688 = vst.msk [vmem:[%s7 + $0x28] sm:$0xff] %vm64, %v1656
  %1689 = vst.msk [vmem:[%s7 + $0x30] sm:$0xff] %vm64, %v1657
  %1690 = vst.msk [vmem:[%s7 + $0x38] sm:$0xff] %vm64, %v1658
  %1691 = vst.msk [vmem:[%s7 + $0x40] sm:$0xff] %vm64, %v1659
  %1692 = vst.msk [vmem:[%s7 + $0x48] sm:$0xff] %vm64, %v1660
  %1693 = vst.msk [vmem:[%s7 + $0x50] sm:$0xff] %vm64, %v1661
  %1694 = vst.msk [vmem:[%s7 + $0x58] sm:$0xff] %vm64, %v1662
  %1695 = vst.msk [vmem:[%s7 + $0x60] sm:$0xff] %vm64, %v1663
  %1696 = vst.msk [vmem:[%s7 + $0x68] sm:$0xff] %vm64, %v1664
  %1697 = vst.msk [vmem:[%s7 + $0x70] sm:$0xff] %vm64, %v1665
  %1698 = vst.msk [vmem:[%s7 + $0x78] sm:$0xff] %vm64, %v1666
  %1699 = vst.msk [vmem:[%s7 + $0x80] sm:$0xff] %vm64, %v1667
  %1700 = vst.msk [vmem:[%s7 + $0x88] sm:$0xff] %vm64, %v1668
  %1701 = vst.msk [vmem:[%s7 + $0x90] sm:$0xff] %vm64, %v1669
  %1702 = vst.msk [vmem:[%s7 + $0x98] sm:$0xff] %vm64, %v1670
  %1703 = vst.msk [vmem:[%s7 + $0xa0] sm:$0xff] %vm64, %v1671
  %1704 = vst.msk [vmem:[%s7 + $0xa8] sm:$0xff] %vm64, %v1672
  %1705 = vst.msk [vmem:[%s7 + $0xb0] sm:$0xff] %vm64, %v1673
  %1706 = vst.msk [vmem:[%s7 + $0xb8] sm:$0xff] %vm64, %v1674
  %1707 = vst.msk [vmem:[%s7 + $0xc0] sm:$0xff] %vm64, %v1675
  %1708 = vst.msk [vmem:[%s7 + $0xc8] sm:$0xff] %vm64, %v1676
  %1709 = vst.msk [vmem:[%s7 + $0xd0] sm:$0xff] %vm64, %v1677
  %1710 = vst.msk [vmem:[%s7 + $0xd8] sm:$0xff] %vm64, %v1678
  %1711 = vst.msk [vmem:[%s7 + $0xe0] sm:$0xff] %vm64, %v1679
  %1712 = vst.msk [vmem:[%s7 + $0xe8] sm:$0xff] %vm64, %v1680
  %1713 = vst.msk [vmem:[%s7 + $0xf0] sm:$0xff] %vm64, %v1681
  %1714 = vst.msk [vmem:[%s7 + $0xf8] sm:$0xff] %vm64, %v1682
  // Predicated region
  $region30: #{inverted_residual_pallas.1} parent=0 // pred_check
    _
  $region31: #{inverted_residual_pallas.1} parent=0 // pred_check_branch
    %1716 = sbr.rel (0) target = $region33
  $region32: #{inverted_residual_pallas.1} parent=0 // pred_region
    _
  $region33: #{inverted_residual_pallas.1} parent=0 // pred_fallthru
    _
  // Predicated region
  $region34: #{inverted_residual_pallas.1} parent=0 // pred_check
    _
  $region35: #{inverted_residual_pallas.1} parent=0 // pred_check_branch
    %1718 = sbr.rel (0) target = $region37
  $region36: #{inverted_residual_pallas.1} parent=0 // pred_region
    _
  $region37: #{inverted_residual_pallas.1} parent=0 // pred_fallthru
    _

</llo_original>
